<compile_context>
chip_gen: v6e
topology: v6e:2x2x1
jax: 0.10.0
libtpu: 0.0.40
codegen_flags: <defaults>
</compile_context>

<pallas_src>
import jax
import jax.numpy as jnp
from jax.experimental import pallas as pl
from jax.experimental.pallas import tpu as pltpu

_LANE = 128     # f32 lane width
_SUBLANE = 8    # f32 sublane width
_GATE_ORDER = (0, 1, 3, 2)   # PyTorch rows [i, f, g, o] -> kernel layout [i, f, o, g]


def _round_up(n, m):
    return ((n + m - 1) // m) * m


def _cdiv(a, b):
    return -(-a // b)


def _prep_gates(w, hg):
    """w: (4H, ...) PyTorch-stacked gates; reorder to [i, f, o, g], zero-pad each gate to hg rows."""
    h = w.shape[0] // 4
    pad = [(0, hg - h)] + [(0, 0)] * (w.ndim - 1)
    return jnp.concatenate(
        [jnp.pad(w[k * h:(k + 1) * h], pad) for k in _GATE_ORDER], axis=0)


def _choose_t_chunk(T, target):
    """Largest divisor of T <= target (no gx time-padding); pad-fallback for awkward T."""
    target = max(1, min(T, target))
    best = 1
    for d in range(1, target + 1):
        if T % d == 0:
            best = d
    if T > target and best < max(1, target // 2):
        best = target   # fall back: zero LEFT-pad gx in time (exact no-op steps)
    return best


def _lstm_chunk_kernel(gx_ref, whh_ref, out_ref, h_sc, c_sc):
    # gx_ref  : (t_chunk, bb, 4*hg)  precomputed x @ W_ih^T + bias (f32 or bf16)
    # whh_ref : (hg, 4*hg)           W_hh^T, VMEM-resident (single-buffered) across grid
    # out_ref : (bb, hg) f32         h_T for this batch block, written on the last chunk
    # h_sc/c_sc : (bb, hg) f32       carried hidden / cell state
    chunk = pl.program_id(1)

    @pl.when(chunk == 0)
    def _():
        h_sc[...] = jnp.zeros_like(h_sc)
        c_sc[...] = jnp.zeros_like(c_sc)

    hg = h_sc.shape[-1]
    t_chunk = gx_ref.shape[0]
    whh = whh_ref[...]          # hoisted out of the step loop

    def step(s, carry):
        h, c = carry
        gates = gx_ref[s].astype(jnp.float32) + jnp.dot(
            h.astype(whh.dtype), whh, preferred_element_type=jnp.float32)
        # Gate layout [i, f, o, g]: one sigmoid slab (via tanh: 1 EUP op) + one tanh slab.
        sig = 0.5 * jnp.tanh(0.5 * gates[:, :3 * hg]) + 0.5
        g_t = jnp.tanh(gates[:, 3 * hg:])
        c_new = sig[:, hg:2 * hg] * c + sig[:, :hg] * g_t
        h_new = sig[:, 2 * hg:3 * hg] * jnp.tanh(c_new)
        return h_new, c_new

    h_f, c_f = jax.lax.fori_loop(0, t_chunk, step, (h_sc[...], c_sc[...]),
                                 unroll=min(t_chunk, 8))
    h_sc[...] = h_f
    c_sc[...] = c_f

    @pl.when(chunk == pl.num_programs(1) - 1)
    def _():
        out_ref[...] = h_f.astype(out_ref.dtype)


def lstm_model_forward(x_bsi, params, *, max_t_chunk=32, num_batch_blocks=1,
                       gx_dtype=jnp.float32, whh_dtype=jnp.float32):
    """x_bsi: (batch, seq, input) f32, PyTorch batch_first layout. Returns (batch, 1).

    gx_dtype / whh_dtype: set to jnp.bfloat16 for production (halves HBM/VMEM traffic,
    f32 accumulation and state); defaults stay f32 for exact parity with the reference.
    num_batch_blocks: set to 2 on v7x when the padded batch is >= 16 rows (megacore).
    """
    B, T, I = x_bsi.shape
    w_ih, w_hh = params["w_ih"], params["w_hh"]      # (4H, I), (4H, H)
    bias = params["b_ih"] + params["b_hh"]           # (4H,)
    w_fc, b_fc = params["w_fc"], params["b_fc"]      # (1, H), (1,)
    H = w_hh.shape[1]

    # Per-gate width: compact layout when H < 128 and 4H is already lane-aligned
    # (halves per-step MXU columns and EUP/VPU elements vs padding each gate to 128).
    if H < _LANE and (4 * H) % _LANE == 0:
        hg = H
    else:
        hg = _round_up(H, _LANE)

    # Batch blocking (grid axis 0, "parallel": shardable across TCs on v7x).
    Bp = _round_up(B, _SUBLANE)
    nb = max(1, int(num_batch_blocks))
    bb = _round_up(_cdiv(Bp, nb), _SUBLANE)
    Bp = bb * nb

    # Time chunking: keep the double-buffered gx block under ~12 MiB, prefer a divisor
    # of T (no gx padding pass), amortize the ~0.35us per-grid-step overhead.
    gx_bytes = jnp.dtype(gx_dtype).itemsize
    whh_bytes = jnp.dtype(whh_dtype).itemsize
    t_budget = max(1, (12 << 20) // max(1, 2 * bb * 4 * hg * gx_bytes))
    t_chunk = _choose_t_chunk(T, min(max_t_chunk, t_budget))
    Tp = _round_up(T, t_chunk)
    n_chunks = Tp // t_chunk

    # Weight prep: gates reordered [i, f, o, g], each gate padded to hg rows; padded
    # rows/cols and padded bias entries are zero, so padded lanes stay exactly zero.
    wih_t = _prep_gates(w_ih, hg).T.astype(jnp.float32)                          # (I, 4hg)
    whh_t = jnp.pad(_prep_gates(w_hh, hg), ((0, 0), (0, hg - H))).T.astype(whh_dtype)  # (hg, 4hg)
    bias_p = _prep_gates(bias[:, None], hg)[:, 0]                                # (4hg,)

    # Hoisted input projection.  Pad/transpose the SMALL x (I << 4hg) before the matmul
    # so the large gx is produced directly in (T, Bp, 4hg) layout — no extra HBM pass.
    x_p = jnp.pad(x_bsi, ((0, Bp - B), (0, 0), (0, 0)))          # padded rows are discarded
    x_tbi = jnp.transpose(x_p, (1, 0, 2)).reshape(Tp and T * Bp, I) if True else None
    x_tbi = jnp.transpose(x_p, (1, 0, 2)).reshape(T * Bp, I)
    gx = (jnp.dot(x_tbi, wih_t, preferred_element_type=jnp.float32) + bias_p)
    gx = gx.astype(gx_dtype).reshape(T, Bp, 4 * hg)
    if Tp != T:
        # Rare fallback: LEFT-pad time with zero POST-bias pre-activations (exact no-ops
        # for a zero initial state: sigmoid(0)*0 + sigmoid(0)*tanh(0) = 0).
        gx = jnp.pad(gx, ((Tp - T, 0), (0, 0), (0, 0)))

    # VMEM budget (worst case: weight double-buffered) and scoped limit.
    vmem_need = (2 * t_chunk * bb * 4 * hg * gx_bytes       # gx double buffer
                 + 2 * hg * 4 * hg * whh_bytes              # W_hh^T
                 + 2 * bb * hg * 4                          # output block
                 + 2 * bb * hg * 4)                         # h/c scratch
    vmem_limit = int(min(max(2 * vmem_need, 16 << 20), 64 << 20))

    def _build_call(single_buffered_weight):
        whh_kwargs = ({"pipeline_mode": pl.Buffered(1)} if single_buffered_weight else {})
        return pl.pallas_call(
            _lstm_chunk_kernel,
            out_shape=jax.ShapeDtypeStruct((Bp, hg), jnp.float32),
            grid_spec=pltpu.PrefetchScalarGridSpec(
                num_scalar_prefetch=0,
                grid=(nb, n_chunks),
                in_specs=[
                    # Precomputed gate pre-activations, t_chunk steps per grid iter.
                    pl.BlockSpec((t_chunk, bb, 4 * hg), lambda b, c: (c, b, 0)),
                    # W_hh^T resident across the grid (constant index_map).
                    pl.BlockSpec((hg, 4 * hg), lambda b, c: (0, 0), **whh_kwargs),
                ],
                out_specs=pl.BlockSpec((bb, hg), lambda b, c: (b, 0)),
                scratch_shapes=[pltpu.VMEM((bb, hg), jnp.float32),   # h state
                                pltpu.VMEM((bb, hg), jnp.float32)],  # c state
            ),
            compiler_params=pltpu.CompilerParams(
                dimension_semantics=("parallel", "arbitrary"),
                vmem_limit_bytes=vmem_limit),
        )

    try:
        h_last = _build_call(True)(gx, whh_t)
    except Exception:
        # TODO(synk): fallback if this Pallas build rejects pl.Buffered(1) on an input;
        # costs one redundant VMEM copy of W_hh^T, nothing else.
        h_last = _build_call(False)(gx, whh_t)

    # Final Linear(hidden, 1) on the unpadded h_T in XLA (lane-dense kernel output,
    # no 1-lane masked store / wasted MXU pass inside the kernel).
    return h_last[:B, :H] @ w_fc.T + b_fc


def init_params(key, input_size, hidden_size):
    """Deterministic init mirroring PyTorch nn.LSTM / nn.Linear (U[-1/sqrt(H), 1/sqrt(H)])."""
    k = 1.0 / jnp.sqrt(hidden_size)
    ks = jax.random.split(key, 6)
    return {
        "w_ih": jax.random.uniform(ks[0], (4 * hidden_size, input_size), jnp.float32, -k, k),
        "w_hh": jax.random.uniform(ks[1], (4 * hidden_size, hidden_size), jnp.float32, -k, k),
        "b_ih": jax.random.uniform(ks[2], (4 * hidden_size,), jnp.float32, -k, k),
        "b_hh": jax.random.uniform(ks[3], (4 * hidden_size,), jnp.float32, -k, k),
        "w_fc": jax.random.uniform(ks[4], (1, hidden_size), jnp.float32, -k, k),
        "b_fc": jax.random.uniform(ks[5], (1,), jnp.float32, -k, k),
    }


def _reference_forward(x_bsi, params):
    """Pure-JAX reference of PyTorch LSTMModel.forward (gate order [i, f, g, o])."""
    B, T, I = x_bsi.shape
    H = params["w_hh"].shape[1]
    wih_t, whh_t = params["w_ih"].T, params["w_hh"].T
    bias = params["b_ih"] + params["b_hh"]
    h = jnp.zeros((B, H), jnp.float32)
    c = jnp.zeros((B, H), jnp.float32)
    for t in range(T):
        gates = x_bsi[:, t, :] @ wih_t + h @ whh_t + bias
        i_g = jax.nn.sigmoid(gates[:, 0 * H:1 * H])
        f_g = jax.nn.sigmoid(gates[:, 1 * H:2 * H])
        g_g = jnp.tanh(gates[:, 2 * H:3 * H])
        o_g = jax.nn.sigmoid(gates[:, 3 * H:4 * H])
        c = f_g * c + i_g * g_g
        h = o_g * jnp.tanh(c)
    return h @ params["w_fc"].T + params["b_fc"]


if __name__ == "__main__":
    batch, seq, input_size, hidden_size = 2, 8, 4, 64

    key = jax.random.PRNGKey(0)
    k_x, k_p = jax.random.split(key)
    x = jax.random.normal(k_x, (batch, seq, input_size), jnp.float32)
    params = init_params(k_p, input_size, hidden_size)

    ref = _reference_forward(x, params)

    # f32-streamed path: exact parity with the reference.
    out = jax.block_until_ready(lstm_model_forward(x, params))
    assert out.shape == (batch, 1)
    assert jnp.allclose(out, ref, atol=1e-4, rtol=1e-4), (out, ref)

    # bf16-streamed path (production setting: halves gx HBM traffic and W_hh VMEM;
    # f32 state & accumulation) — looser tolerance per the bf16 inputs.
    out_bf16 = jax.block_until_ready(
        lstm_model_forward(x, params, gx_dtype=jnp.bfloat16, whh_dtype=jnp.bfloat16))
    assert jnp.allclose(out_bf16, ref, atol=2e-2, rtol=2e-2), (out_bf16, ref)

    print("KERNEL_OK")
</pallas_src>

<mosaic_0001>
module attributes {stable_mosaic.version = 11 : i64} {
  func.func @_lstm_chunk_kernel(%arg0: i32, %arg1: i32, %arg2: memref<8x8x256xf32, #tpu.memory_space<vmem>>, %arg3: memref<64x256xf32, #tpu.memory_space<vmem>>, %arg4: memref<8x64xf32, #tpu.memory_space<vmem>>, %arg5: memref<8x64xf32, #tpu.memory_space<vmem>>, %arg6: memref<8x64xf32, #tpu.memory_space<vmem>>) attributes {dimension_semantics = [#tpu.dimension_semantics<parallel>, #tpu.dimension_semantics<arbitrary>], iteration_bounds = array<i64: 1, 1>, scalar_prefetch = 0 : i64, scratch_operands = 2 : i64, tpu.core_type = #tpu.core_type<tc>, window_params = [{transform_indices = @transform_0, window_bounds = array<i64: 8, 8, 256>}, {pipeline_mode = #tpu.pipeline_mode<synchronous>, transform_indices = @transform_1, window_bounds = array<i64: 64, 256>}, {transform_indices = @transform_2, window_bounds = array<i64: 8, 64>}]} {
    %c0_i32 = arith.constant 0 : i32
    %0 = arith.cmpi eq, %arg1, %c0_i32 : i32
    %1 = arith.extui %0 : i1 to i32
    %c0_i32_0 = arith.constant 0 : i32
    %2 = arith.cmpi ne, %1, %c0_i32_0 : i32
    scf.if %2 {
      %cst_60 = arith.constant 0.000000e+00 : f32
      %195 = vector.broadcast %cst_60 : f32 to vector<8x64xf32>
      %c0_61 = arith.constant 0 : index
      %c0_62 = arith.constant 0 : index
      %196 = vector.load %arg5[%c0_61, %c0_62] : memref<8x64xf32, #tpu.memory_space<vmem>>, vector<8x64xf32>
      tpu.vector_store %arg5[%c0_61, %c0_62], %195 {strides = array<i32>} : memref<8x64xf32, #tpu.memory_space<vmem>>, vector<8x64xf32>,
      %cst_63 = arith.constant 0.000000e+00 : f32
      %197 = vector.broadcast %cst_63 : f32 to vector<8x64xf32>
      %c0_64 = arith.constant 0 : index
      %c0_65 = arith.constant 0 : index
      %198 = vector.load %arg6[%c0_64, %c0_65] : memref<8x64xf32, #tpu.memory_space<vmem>>, vector<8x64xf32>
      tpu.vector_store %arg6[%c0_64, %c0_65], %197 {strides = array<i32>} : memref<8x64xf32, #tpu.memory_space<vmem>>, vector<8x64xf32>,
    } else {
    }
    %c0 = arith.constant 0 : index
    %c0_1 = arith.constant 0 : index
    %3 = vector.load %arg3[%c0, %c0_1] : memref<64x256xf32, #tpu.memory_space<vmem>>, vector<64x256xf32>
    %c0_2 = arith.constant 0 : index
    %c0_3 = arith.constant 0 : index
    %4 = vector.load %arg5[%c0_2, %c0_3] : memref<8x64xf32, #tpu.memory_space<vmem>>, vector<8x64xf32>
    %c0_4 = arith.constant 0 : index
    %c0_5 = arith.constant 0 : index
    %5 = vector.load %arg6[%c0_4, %c0_5] : memref<8x64xf32, #tpu.memory_space<vmem>>, vector<8x64xf32>
    %c0_i32_6 = arith.constant 0 : i32
    %6 = arith.index_cast %c0_i32_6 : i32 to index
    %c0_7 = arith.constant 0 : index
    %c0_8 = arith.constant 0 : index
    %7 = vector.load %arg2[%6, %c0_7, %c0_8] : memref<8x8x256xf32, #tpu.memory_space<vmem>>, vector<1x8x256xf32>
    %8 = vector.shape_cast %7 : vector<1x8x256xf32> to vector<8x256xf32>
    %cst = arith.constant dense<0.000000e+00> : vector<8x256xf32>
    %9 = tpu.matmul %4, %3, %cst {dimension_numbers = #tpu.dot_dimension_numbers<[1], [0], [0], [1], [0, 0, 1, 1], [], []>} : vector<8x64xf32>, vector<64x256xf32>, vector<8x256xf32> -> vector<8x256xf32>
    %10 = arith.addf %8, %9 : vector<8x256xf32>
    %11 = vector.extract_strided_slice %10 {offsets = [0, 0], sizes = [8, 192], strides = [1, 1]} : vector<8x256xf32> to vector<8x192xf32>
    %cst_9 = arith.constant 5.000000e-01 : f32
    %12 = vector.broadcast %cst_9 : f32 to vector<8x192xf32>
    %13 = arith.mulf %12, %11 : vector<8x192xf32>
    %14 = math.tanh %13 : vector<8x192xf32>
    %cst_10 = arith.constant 5.000000e-01 : f32
    %15 = vector.broadcast %cst_10 : f32 to vector<8x192xf32>
    %16 = arith.mulf %15, %14 : vector<8x192xf32>
    %cst_11 = arith.constant 5.000000e-01 : f32
    %17 = vector.broadcast %cst_11 : f32 to vector<8x192xf32>
    %18 = arith.addf %16, %17 : vector<8x192xf32>
    %19 = vector.extract_strided_slice %10 {offsets = [0, 192], sizes = [8, 64], strides = [1, 1]} : vector<8x256xf32> to vector<8x64xf32>
    %20 = math.tanh %19 : vector<8x64xf32>
    %21 = vector.extract_strided_slice %18 {offsets = [0, 64], sizes = [8, 64], strides = [1, 1]} : vector<8x192xf32> to vector<8x64xf32>
    %22 = arith.mulf %21, %5 : vector<8x64xf32>
    %23 = vector.extract_strided_slice %18 {offsets = [0, 0], sizes = [8, 64], strides = [1, 1]} : vector<8x192xf32> to vector<8x64xf32>
    %24 = arith.mulf %23, %20 : vector<8x64xf32>
    %25 = arith.addf %22, %24 : vector<8x64xf32>
    %26 = vector.extract_strided_slice %18 {offsets = [0, 128], sizes = [8, 64], strides = [1, 1]} : vector<8x192xf32> to vector<8x64xf32>
    %27 = math.tanh %25 : vector<8x64xf32>
    %28 = arith.mulf %26, %27 : vector<8x64xf32>
    %c1_i32 = arith.constant 1 : i32
    %29 = arith.index_cast %c1_i32 : i32 to index
    %c0_12 = arith.constant 0 : index
    %c0_13 = arith.constant 0 : index
    %30 = vector.load %arg2[%29, %c0_12, %c0_13] : memref<8x8x256xf32, #tpu.memory_space<vmem>>, vector<1x8x256xf32>
    %31 = vector.shape_cast %30 : vector<1x8x256xf32> to vector<8x256xf32>
    %cst_14 = arith.constant dense<0.000000e+00> : vector<8x256xf32>
    %32 = tpu.matmul %28, %3, %cst_14 {dimension_numbers = #tpu.dot_dimension_numbers<[1], [0], [0], [1], [0, 0, 1, 1], [], []>} : vector<8x64xf32>, vector<64x256xf32>, vector<8x256xf32> -> vector<8x256xf32>
    %33 = arith.addf %31, %32 : vector<8x256xf32>
    %34 = vector.extract_strided_slice %33 {offsets = [0, 0], sizes = [8, 192], strides = [1, 1]} : vector<8x256xf32> to vector<8x192xf32>
    %cst_15 = arith.constant 5.000000e-01 : f32
    %35 = vector.broadcast %cst_15 : f32 to vector<8x192xf32>
    %36 = arith.mulf %35, %34 : vector<8x192xf32>
    %37 = math.tanh %36 : vector<8x192xf32>
    %cst_16 = arith.constant 5.000000e-01 : f32
    %38 = vector.broadcast %cst_16 : f32 to vector<8x192xf32>
    %39 = arith.mulf %38, %37 : vector<8x192xf32>
    %cst_17 = arith.constant 5.000000e-01 : f32
    %40 = vector.broadcast %cst_17 : f32 to vector<8x192xf32>
    %41 = arith.addf %39, %40 : vector<8x192xf32>
    %42 = vector.extract_strided_slice %33 {offsets = [0, 192], sizes = [8, 64], strides = [1, 1]} : vector<8x256xf32> to vector<8x64xf32>
    %43 = math.tanh %42 : vector<8x64xf32>
    %44 = vector.extract_strided_slice %41 {offsets = [0, 64], sizes = [8, 64], strides = [1, 1]} : vector<8x192xf32> to vector<8x64xf32>
    %45 = arith.mulf %44, %25 : vector<8x64xf32>
    %46 = vector.extract_strided_slice %41 {offsets = [0, 0], sizes = [8, 64], strides = [1, 1]} : vector<8x192xf32> to vector<8x64xf32>
    %47 = arith.mulf %46, %43 : vector<8x64xf32>
    %48 = arith.addf %45, %47 : vector<8x64xf32>
    %49 = vector.extract_strided_slice %41 {offsets = [0, 128], sizes = [8, 64], strides = [1, 1]} : vector<8x192xf32> to vector<8x64xf32>
    %50 = math.tanh %48 : vector<8x64xf32>
    %51 = arith.mulf %49, %50 : vector<8x64xf32>
    %c2_i32 = arith.constant 2 : i32
    %52 = arith.index_cast %c2_i32 : i32 to index
    %c0_18 = arith.constant 0 : index
    %c0_19 = arith.constant 0 : index
    %53 = vector.load %arg2[%52, %c0_18, %c0_19] : memref<8x8x256xf32, #tpu.memory_space<vmem>>, vector<1x8x256xf32>
    %54 = vector.shape_cast %53 : vector<1x8x256xf32> to vector<8x256xf32>
    %cst_20 = arith.constant dense<0.000000e+00> : vector<8x256xf32>
    %55 = tpu.matmul %51, %3, %cst_20 {dimension_numbers = #tpu.dot_dimension_numbers<[1], [0], [0], [1], [0, 0, 1, 1], [], []>} : vector<8x64xf32>, vector<64x256xf32>, vector<8x256xf32> -> vector<8x256xf32>
    %56 = arith.addf %54, %55 : vector<8x256xf32>
    %57 = vector.extract_strided_slice %56 {offsets = [0, 0], sizes = [8, 192], strides = [1, 1]} : vector<8x256xf32> to vector<8x192xf32>
    %cst_21 = arith.constant 5.000000e-01 : f32
    %58 = vector.broadcast %cst_21 : f32 to vector<8x192xf32>
    %59 = arith.mulf %58, %57 : vector<8x192xf32>
    %60 = math.tanh %59 : vector<8x192xf32>
    %cst_22 = arith.constant 5.000000e-01 : f32
    %61 = vector.broadcast %cst_22 : f32 to vector<8x192xf32>
    %62 = arith.mulf %61, %60 : vector<8x192xf32>
    %cst_23 = arith.constant 5.000000e-01 : f32
    %63 = vector.broadcast %cst_23 : f32 to vector<8x192xf32>
    %64 = arith.addf %62, %63 : vector<8x192xf32>
    %65 = vector.extract_strided_slice %56 {offsets = [0, 192], sizes = [8, 64], strides = [1, 1]} : vector<8x256xf32> to vector<8x64xf32>
    %66 = math.tanh %65 : vector<8x64xf32>
    %67 = vector.extract_strided_slice %64 {offsets = [0, 64], sizes = [8, 64], strides = [1, 1]} : vector<8x192xf32> to vector<8x64xf32>
    %68 = arith.mulf %67, %48 : vector<8x64xf32>
    %69 = vector.extract_strided_slice %64 {offsets = [0, 0], sizes = [8, 64], strides = [1, 1]} : vector<8x192xf32> to vector<8x64xf32>
    %70 = arith.mulf %69, %66 : vector<8x64xf32>
    %71 = arith.addf %68, %70 : vector<8x64xf32>
    %72 = vector.extract_strided_slice %64 {offsets = [0, 128], sizes = [8, 64], strides = [1, 1]} : vector<8x192xf32> to vector<8x64xf32>
    %73 = math.tanh %71 : vector<8x64xf32>
    %74 = arith.mulf %72, %73 : vector<8x64xf32>
    %c3_i32 = arith.constant 3 : i32
    %75 = arith.index_cast %c3_i32 : i32 to index
    %c0_24 = arith.constant 0 : index
    %c0_25 = arith.constant 0 : index
    %76 = vector.load %arg2[%75, %c0_24, %c0_25] : memref<8x8x256xf32, #tpu.memory_space<vmem>>, vector<1x8x256xf32>
    %77 = vector.shape_cast %76 : vector<1x8x256xf32> to vector<8x256xf32>
    %cst_26 = arith.constant dense<0.000000e+00> : vector<8x256xf32>
    %78 = tpu.matmul %74, %3, %cst_26 {dimension_numbers = #tpu.dot_dimension_numbers<[1], [0], [0], [1], [0, 0, 1, 1], [], []>} : vector<8x64xf32>, vector<64x256xf32>, vector<8x256xf32> -> vector<8x256xf32>
    %79 = arith.addf %77, %78 : vector<8x256xf32>
    %80 = vector.extract_strided_slice %79 {offsets = [0, 0], sizes = [8, 192], strides = [1, 1]} : vector<8x256xf32> to vector<8x192xf32>
    %cst_27 = arith.constant 5.000000e-01 : f32
    %81 = vector.broadcast %cst_27 : f32 to vector<8x192xf32>
    %82 = arith.mulf %81, %80 : vector<8x192xf32>
    %83 = math.tanh %82 : vector<8x192xf32>
    %cst_28 = arith.constant 5.000000e-01 : f32
    %84 = vector.broadcast %cst_28 : f32 to vector<8x192xf32>
    %85 = arith.mulf %84, %83 : vector<8x192xf32>
    %cst_29 = arith.constant 5.000000e-01 : f32
    %86 = vector.broadcast %cst_29 : f32 to vector<8x192xf32>
    %87 = arith.addf %85, %86 : vector<8x192xf32>
    %88 = vector.extract_strided_slice %79 {offsets = [0, 192], sizes = [8, 64], strides = [1, 1]} : vector<8x256xf32> to vector<8x64xf32>
    %89 = math.tanh %88 : vector<8x64xf32>
    %90 = vector.extract_strided_slice %87 {offsets = [0, 64], sizes = [8, 64], strides = [1, 1]} : vector<8x192xf32> to vector<8x64xf32>
    %91 = arith.mulf %90, %71 : vector<8x64xf32>
    %92 = vector.extract_strided_slice %87 {offsets = [0, 0], sizes = [8, 64], strides = [1, 1]} : vector<8x192xf32> to vector<8x64xf32>
    %93 = arith.mulf %92, %89 : vector<8x64xf32>
    %94 = arith.addf %91, %93 : vector<8x64xf32>
    %95 = vector.extract_strided_slice %87 {offsets = [0, 128], sizes = [8, 64], strides = [1, 1]} : vector<8x192xf32> to vector<8x64xf32>
    %96 = math.tanh %94 : vector<8x64xf32>
    %97 = arith.mulf %95, %96 : vector<8x64xf32>
    %c4_i32 = arith.constant 4 : i32
    %98 = arith.index_cast %c4_i32 : i32 to index
    %c0_30 = arith.constant 0 : index
    %c0_31 = arith.constant 0 : index
    %99 = vector.load %arg2[%98, %c0_30, %c0_31] : memref<8x8x256xf32, #tpu.memory_space<vmem>>, vector<1x8x256xf32>
    %100 = vector.shape_cast %99 : vector<1x8x256xf32> to vector<8x256xf32>
    %cst_32 = arith.constant dense<0.000000e+00> : vector<8x256xf32>
    %101 = tpu.matmul %97, %3, %cst_32 {dimension_numbers = #tpu.dot_dimension_numbers<[1], [0], [0], [1], [0, 0, 1, 1], [], []>} : vector<8x64xf32>, vector<64x256xf32>, vector<8x256xf32> -> vector<8x256xf32>
    %102 = arith.addf %100, %101 : vector<8x256xf32>
    %103 = vector.extract_strided_slice %102 {offsets = [0, 0], sizes = [8, 192], strides = [1, 1]} : vector<8x256xf32> to vector<8x192xf32>
    %cst_33 = arith.constant 5.000000e-01 : f32
    %104 = vector.broadcast %cst_33 : f32 to vector<8x192xf32>
    %105 = arith.mulf %104, %103 : vector<8x192xf32>
    %106 = math.tanh %105 : vector<8x192xf32>
    %cst_34 = arith.constant 5.000000e-01 : f32
    %107 = vector.broadcast %cst_34 : f32 to vector<8x192xf32>
    %108 = arith.mulf %107, %106 : vector<8x192xf32>
    %cst_35 = arith.constant 5.000000e-01 : f32
    %109 = vector.broadcast %cst_35 : f32 to vector<8x192xf32>
    %110 = arith.addf %108, %109 : vector<8x192xf32>
    %111 = vector.extract_strided_slice %102 {offsets = [0, 192], sizes = [8, 64], strides = [1, 1]} : vector<8x256xf32> to vector<8x64xf32>
    %112 = math.tanh %111 : vector<8x64xf32>
    %113 = vector.extract_strided_slice %110 {offsets = [0, 64], sizes = [8, 64], strides = [1, 1]} : vector<8x192xf32> to vector<8x64xf32>
    %114 = arith.mulf %113, %94 : vector<8x64xf32>
    %115 = vector.extract_strided_slice %110 {offsets = [0, 0], sizes = [8, 64], strides = [1, 1]} : vector<8x192xf32> to vector<8x64xf32>
    %116 = arith.mulf %115, %112 : vector<8x64xf32>
    %117 = arith.addf %114, %116 : vector<8x64xf32>
    %118 = vector.extract_strided_slice %110 {offsets = [0, 128], sizes = [8, 64], strides = [1, 1]} : vector<8x192xf32> to vector<8x64xf32>
    %119 = math.tanh %117 : vector<8x64xf32>
    %120 = arith.mulf %118, %119 : vector<8x64xf32>
    %c5_i32 = arith.constant 5 : i32
    %121 = arith.index_cast %c5_i32 : i32 to index
    %c0_36 = arith.constant 0 : index
    %c0_37 = arith.constant 0 : index
    %122 = vector.load %arg2[%121, %c0_36, %c0_37] : memref<8x8x256xf32, #tpu.memory_space<vmem>>, vector<1x8x256xf32>
    %123 = vector.shape_cast %122 : vector<1x8x256xf32> to vector<8x256xf32>
    %cst_38 = arith.constant dense<0.000000e+00> : vector<8x256xf32>
    %124 = tpu.matmul %120, %3, %cst_38 {dimension_numbers = #tpu.dot_dimension_numbers<[1], [0], [0], [1], [0, 0, 1, 1], [], []>} : vector<8x64xf32>, vector<64x256xf32>, vector<8x256xf32> -> vector<8x256xf32>
    %125 = arith.addf %123, %124 : vector<8x256xf32>
    %126 = vector.extract_strided_slice %125 {offsets = [0, 0], sizes = [8, 192], strides = [1, 1]} : vector<8x256xf32> to vector<8x192xf32>
    %cst_39 = arith.constant 5.000000e-01 : f32
    %127 = vector.broadcast %cst_39 : f32 to vector<8x192xf32>
    %128 = arith.mulf %127, %126 : vector<8x192xf32>
    %129 = math.tanh %128 : vector<8x192xf32>
    %cst_40 = arith.constant 5.000000e-01 : f32
    %130 = vector.broadcast %cst_40 : f32 to vector<8x192xf32>
    %131 = arith.mulf %130, %129 : vector<8x192xf32>
    %cst_41 = arith.constant 5.000000e-01 : f32
    %132 = vector.broadcast %cst_41 : f32 to vector<8x192xf32>
    %133 = arith.addf %131, %132 : vector<8x192xf32>
    %134 = vector.extract_strided_slice %125 {offsets = [0, 192], sizes = [8, 64], strides = [1, 1]} : vector<8x256xf32> to vector<8x64xf32>
    %135 = math.tanh %134 : vector<8x64xf32>
    %136 = vector.extract_strided_slice %133 {offsets = [0, 64], sizes = [8, 64], strides = [1, 1]} : vector<8x192xf32> to vector<8x64xf32>
    %137 = arith.mulf %136, %117 : vector<8x64xf32>
    %138 = vector.extract_strided_slice %133 {offsets = [0, 0], sizes = [8, 64], strides = [1, 1]} : vector<8x192xf32> to vector<8x64xf32>
    %139 = arith.mulf %138, %135 : vector<8x64xf32>
    %140 = arith.addf %137, %139 : vector<8x64xf32>
    %141 = vector.extract_strided_slice %133 {offsets = [0, 128], sizes = [8, 64], strides = [1, 1]} : vector<8x192xf32> to vector<8x64xf32>
    %142 = math.tanh %140 : vector<8x64xf32>
    %143 = arith.mulf %141, %142 : vector<8x64xf32>
    %c6_i32 = arith.constant 6 : i32
    %144 = arith.index_cast %c6_i32 : i32 to index
    %c0_42 = arith.constant 0 : index
    %c0_43 = arith.constant 0 : index
    %145 = vector.load %arg2[%144, %c0_42, %c0_43] : memref<8x8x256xf32, #tpu.memory_space<vmem>>, vector<1x8x256xf32>
    %146 = vector.shape_cast %145 : vector<1x8x256xf32> to vector<8x256xf32>
    %cst_44 = arith.constant dense<0.000000e+00> : vector<8x256xf32>
    %147 = tpu.matmul %143, %3, %cst_44 {dimension_numbers = #tpu.dot_dimension_numbers<[1], [0], [0], [1], [0, 0, 1, 1], [], []>} : vector<8x64xf32>, vector<64x256xf32>, vector<8x256xf32> -> vector<8x256xf32>
    %148 = arith.addf %146, %147 : vector<8x256xf32>
    %149 = vector.extract_strided_slice %148 {offsets = [0, 0], sizes = [8, 192], strides = [1, 1]} : vector<8x256xf32> to vector<8x192xf32>
    %cst_45 = arith.constant 5.000000e-01 : f32
    %150 = vector.broadcast %cst_45 : f32 to vector<8x192xf32>
    %151 = arith.mulf %150, %149 : vector<8x192xf32>
    %152 = math.tanh %151 : vector<8x192xf32>
    %cst_46 = arith.constant 5.000000e-01 : f32
    %153 = vector.broadcast %cst_46 : f32 to vector<8x192xf32>
    %154 = arith.mulf %153, %152 : vector<8x192xf32>
    %cst_47 = arith.constant 5.000000e-01 : f32
    %155 = vector.broadcast %cst_47 : f32 to vector<8x192xf32>
    %156 = arith.addf %154, %155 : vector<8x192xf32>
    %157 = vector.extract_strided_slice %148 {offsets = [0, 192], sizes = [8, 64], strides = [1, 1]} : vector<8x256xf32> to vector<8x64xf32>
    %158 = math.tanh %157 : vector<8x64xf32>
    %159 = vector.extract_strided_slice %156 {offsets = [0, 64], sizes = [8, 64], strides = [1, 1]} : vector<8x192xf32> to vector<8x64xf32>
    %160 = arith.mulf %159, %140 : vector<8x64xf32>
    %161 = vector.extract_strided_slice %156 {offsets = [0, 0], sizes = [8, 64], strides = [1, 1]} : vector<8x192xf32> to vector<8x64xf32>
    %162 = arith.mulf %161, %158 : vector<8x64xf32>
    %163 = arith.addf %160, %162 : vector<8x64xf32>
    %164 = vector.extract_strided_slice %156 {offsets = [0, 128], sizes = [8, 64], strides = [1, 1]} : vector<8x192xf32> to vector<8x64xf32>
    %165 = math.tanh %163 : vector<8x64xf32>
    %166 = arith.mulf %164, %165 : vector<8x64xf32>
    %c7_i32 = arith.constant 7 : i32
    %167 = arith.index_cast %c7_i32 : i32 to index
    %c0_48 = arith.constant 0 : index
    %c0_49 = arith.constant 0 : index
    %168 = vector.load %arg2[%167, %c0_48, %c0_49] : memref<8x8x256xf32, #tpu.memory_space<vmem>>, vector<1x8x256xf32>
    %169 = vector.shape_cast %168 : vector<1x8x256xf32> to vector<8x256xf32>
    %cst_50 = arith.constant dense<0.000000e+00> : vector<8x256xf32>
    %170 = tpu.matmul %166, %3, %cst_50 {dimension_numbers = #tpu.dot_dimension_numbers<[1], [0], [0], [1], [0, 0, 1, 1], [], []>} : vector<8x64xf32>, vector<64x256xf32>, vector<8x256xf32> -> vector<8x256xf32>
    %171 = arith.addf %169, %170 : vector<8x256xf32>
    %172 = vector.extract_strided_slice %171 {offsets = [0, 0], sizes = [8, 192], strides = [1, 1]} : vector<8x256xf32> to vector<8x192xf32>
    %cst_51 = arith.constant 5.000000e-01 : f32
    %173 = vector.broadcast %cst_51 : f32 to vector<8x192xf32>
    %174 = arith.mulf %173, %172 : vector<8x192xf32>
    %175 = math.tanh %174 : vector<8x192xf32>
    %cst_52 = arith.constant 5.000000e-01 : f32
    %176 = vector.broadcast %cst_52 : f32 to vector<8x192xf32>
    %177 = arith.mulf %176, %175 : vector<8x192xf32>
    %cst_53 = arith.constant 5.000000e-01 : f32
    %178 = vector.broadcast %cst_53 : f32 to vector<8x192xf32>
    %179 = arith.addf %177, %178 : vector<8x192xf32>
    %180 = vector.extract_strided_slice %171 {offsets = [0, 192], sizes = [8, 64], strides = [1, 1]} : vector<8x256xf32> to vector<8x64xf32>
    %181 = math.tanh %180 : vector<8x64xf32>
    %182 = vector.extract_strided_slice %179 {offsets = [0, 64], sizes = [8, 64], strides = [1, 1]} : vector<8x192xf32> to vector<8x64xf32>
    %183 = arith.mulf %182, %163 : vector<8x64xf32>
    %184 = vector.extract_strided_slice %179 {offsets = [0, 0], sizes = [8, 64], strides = [1, 1]} : vector<8x192xf32> to vector<8x64xf32>
    %185 = arith.mulf %184, %181 : vector<8x64xf32>
    %186 = arith.addf %183, %185 : vector<8x64xf32>
    %187 = vector.extract_strided_slice %179 {offsets = [0, 128], sizes = [8, 64], strides = [1, 1]} : vector<8x192xf32> to vector<8x64xf32>
    %188 = math.tanh %186 : vector<8x64xf32>
    %189 = arith.mulf %187, %188 : vector<8x64xf32>
    %c8_i32 = arith.constant 8 : i32
    %c0_54 = arith.constant 0 : index
    %c0_55 = arith.constant 0 : index
    %190 = vector.load %arg5[%c0_54, %c0_55] : memref<8x64xf32, #tpu.memory_space<vmem>>, vector<8x64xf32>
    tpu.vector_store %arg5[%c0_54, %c0_55], %189 {strides = array<i32>} : memref<8x64xf32, #tpu.memory_space<vmem>>, vector<8x64xf32>,
    %c0_56 = arith.constant 0 : index
    %c0_57 = arith.constant 0 : index
    %191 = vector.load %arg6[%c0_56, %c0_57] : memref<8x64xf32, #tpu.memory_space<vmem>>, vector<8x64xf32>
    tpu.vector_store %arg6[%c0_56, %c0_57], %186 {strides = array<i32>} : memref<8x64xf32, #tpu.memory_space<vmem>>, vector<8x64xf32>,
    %c0_i32_58 = arith.constant 0 : i32
    %192 = arith.cmpi eq, %arg1, %c0_i32_58 : i32
    %193 = arith.extui %192 : i1 to i32
    %c0_i32_59 = arith.constant 0 : i32
    %194 = arith.cmpi ne, %193, %c0_i32_59 : i32
    scf.if %194 {
      %c0_60 = arith.constant 0 : index
      %c0_61 = arith.constant 0 : index
      %195 = vector.load %arg4[%c0_60, %c0_61] : memref<8x64xf32, #tpu.memory_space<vmem>>, vector<8x64xf32>
      tpu.vector_store %arg4[%c0_60, %c0_61], %189 {strides = array<i32>} : memref<8x64xf32, #tpu.memory_space<vmem>>, vector<8x64xf32>,
    } else {
    }
    return
  }
  func.func @transform_0(%arg0: i32, %arg1: i32) -> (i32, i32, i32) {
    %c0_i32 = arith.constant 0 : i32
    %c0_i32_0 = arith.constant 0 : i32
    return %arg1, %arg0, %c0_i32 : i32, i32, i32
  }
  func.func @transform_1(%arg0: i32, %arg1: i32) -> (i32, i32) {
    %c0_i32 = arith.constant 0 : i32
    %c0_i32_0 = arith.constant 0 : i32
    %c0_i32_1 = arith.constant 0 : i32
    return %c0_i32, %c0_i32_0 : i32, i32
  }
  func.func @transform_2(%arg0: i32, %arg1: i32) -> (i32, i32) {
    %c0_i32 = arith.constant 0 : i32
    %c0_i32_0 = arith.constant 0 : i32
    return %arg0, %c0_i32 : i32, i32
  }
}

module attributes {stable_mosaic.version = 11 : i64} {
  func.func @_lstm_chunk_kernel(%arg0: i32, %arg1: i32, %arg2: memref<8x8x256xf32, #tpu.memory_space<vmem>>, %arg3: memref<64x256xf32, #tpu.memory_space<vmem>>, %arg4: memref<8x64xf32, #tpu.memory_space<vmem>>, %arg5: memref<8x64xf32, #tpu.memory_space<vmem>>, %arg6: memref<8x64xf32, #tpu.memory_space<vmem>>) attributes {dimension_semantics = [#tpu.dimension_semantics<parallel>, #tpu.dimension_semantics<arbitrary>], iteration_bounds = array<i64: 1, 1>, scalar_prefetch = 0 : i64, scratch_operands = 2 : i64, tpu.core_type = #tpu.core_type<tc>, window_params = [{transform_indices = @transform_0, window_bounds = array<i64: 8, 8, 256>}, {pipeline_mode = #tpu.pipeline_mode<synchronous>, transform_indices = @transform_1, window_bounds = array<i64: 64, 256>}, {transform_indices = @transform_2, window_bounds = array<i64: 8, 64>}]} {
    %c0_i32 = arith.constant 0 : i32
    %0 = arith.cmpi eq, %arg1, %c0_i32 : i32
    %1 = arith.extui %0 : i1 to i32
    %c0_i32_0 = arith.constant 0 : i32
    %2 = arith.cmpi ne, %1, %c0_i32_0 : i32
    scf.if %2 {
      %cst_60 = arith.constant 0.000000e+00 : f32
      %195 = vector.broadcast %cst_60 : f32 to vector<8x64xf32>
      %c0_61 = arith.constant 0 : index
      %c0_62 = arith.constant 0 : index
      %196 = vector.load %arg5[%c0_61, %c0_62] : memref<8x64xf32, #tpu.memory_space<vmem>>, vector<8x64xf32>
      tpu.vector_store %arg5[%c0_61, %c0_62], %195 {strides = array<i32>} : memref<8x64xf32, #tpu.memory_space<vmem>>, vector<8x64xf32>,
      %cst_63 = arith.constant 0.000000e+00 : f32
      %197 = vector.broadcast %cst_63 : f32 to vector<8x64xf32>
      %c0_64 = arith.constant 0 : index
      %c0_65 = arith.constant 0 : index
      %198 = vector.load %arg6[%c0_64, %c0_65] : memref<8x64xf32, #tpu.memory_space<vmem>>, vector<8x64xf32>
      tpu.vector_store %arg6[%c0_64, %c0_65], %197 {strides = array<i32>} : memref<8x64xf32, #tpu.memory_space<vmem>>, vector<8x64xf32>,
    } else {
    }
    %c0 = arith.constant 0 : index
    %c0_1 = arith.constant 0 : index
    %3 = vector.load %arg3[%c0, %c0_1] : memref<64x256xf32, #tpu.memory_space<vmem>>, vector<64x256xf32>
    %c0_2 = arith.constant 0 : index
    %c0_3 = arith.constant 0 : index
    %4 = vector.load %arg5[%c0_2, %c0_3] : memref<8x64xf32, #tpu.memory_space<vmem>>, vector<8x64xf32>
    %c0_4 = arith.constant 0 : index
    %c0_5 = arith.constant 0 : index
    %5 = vector.load %arg6[%c0_4, %c0_5] : memref<8x64xf32, #tpu.memory_space<vmem>>, vector<8x64xf32>
    %c0_i32_6 = arith.constant 0 : i32
    %6 = arith.index_cast %c0_i32_6 : i32 to index
    %c0_7 = arith.constant 0 : index
    %c0_8 = arith.constant 0 : index
    %7 = vector.load %arg2[%6, %c0_7, %c0_8] : memref<8x8x256xf32, #tpu.memory_space<vmem>>, vector<1x8x256xf32>
    %8 = vector.shape_cast %7 : vector<1x8x256xf32> to vector<8x256xf32>
    %cst = arith.constant dense<0.000000e+00> : vector<8x256xf32>
    %9 = tpu.matmul %4, %3, %cst {dimension_numbers = #tpu.dot_dimension_numbers<[1], [0], [0], [1], [0, 0, 1, 1], [], []>} : vector<8x64xf32>, vector<64x256xf32>, vector<8x256xf32> -> vector<8x256xf32>
    %10 = arith.addf %8, %9 : vector<8x256xf32>
    %11 = vector.extract_strided_slice %10 {offsets = [0, 0], sizes = [8, 192], strides = [1, 1]} : vector<8x256xf32> to vector<8x192xf32>
    %cst_9 = arith.constant 5.000000e-01 : f32
    %12 = vector.broadcast %cst_9 : f32 to vector<8x192xf32>
    %13 = arith.mulf %12, %11 : vector<8x192xf32>
    %14 = math.tanh %13 : vector<8x192xf32>
    %cst_10 = arith.constant 5.000000e-01 : f32
    %15 = vector.broadcast %cst_10 : f32 to vector<8x192xf32>
    %16 = arith.mulf %15, %14 : vector<8x192xf32>
    %cst_11 = arith.constant 5.000000e-01 : f32
    %17 = vector.broadcast %cst_11 : f32 to vector<8x192xf32>
    %18 = arith.addf %16, %17 : vector<8x192xf32>
    %19 = vector.extract_strided_slice %10 {offsets = [0, 192], sizes = [8, 64], strides = [1, 1]} : vector<8x256xf32> to vector<8x64xf32>
    %20 = math.tanh %19 : vector<8x64xf32>
    %21 = vector.extract_strided_slice %18 {offsets = [0, 64], sizes = [8, 64], strides = [1, 1]} : vector<8x192xf32> to vector<8x64xf32>
    %22 = arith.mulf %21, %5 : vector<8x64xf32>
    %23 = vector.extract_strided_slice %18 {offsets = [0, 0], sizes = [8, 64], strides = [1, 1]} : vector<8x192xf32> to vector<8x64xf32>
    %24 = arith.mulf %23, %20 : vector<8x64xf32>
    %25 = arith.addf %22, %24 : vector<8x64xf32>
    %26 = vector.extract_strided_slice %18 {offsets = [0, 128], sizes = [8, 64], strides = [1, 1]} : vector<8x192xf32> to vector<8x64xf32>
    %27 = math.tanh %25 : vector<8x64xf32>
    %28 = arith.mulf %26, %27 : vector<8x64xf32>
    %c1_i32 = arith.constant 1 : i32
    %29 = arith.index_cast %c1_i32 : i32 to index
    %c0_12 = arith.constant 0 : index
    %c0_13 = arith.constant 0 : index
    %30 = vector.load %arg2[%29, %c0_12, %c0_13] : memref<8x8x256xf32, #tpu.memory_space<vmem>>, vector<1x8x256xf32>
    %31 = vector.shape_cast %30 : vector<1x8x256xf32> to vector<8x256xf32>
    %cst_14 = arith.constant dense<0.000000e+00> : vector<8x256xf32>
    %32 = tpu.matmul %28, %3, %cst_14 {dimension_numbers = #tpu.dot_dimension_numbers<[1], [0], [0], [1], [0, 0, 1, 1], [], []>} : vector<8x64xf32>, vector<64x256xf32>, vector<8x256xf32> -> vector<8x256xf32>
    %33 = arith.addf %31, %32 : vector<8x256xf32>
    %34 = vector.extract_strided_slice %33 {offsets = [0, 0], sizes = [8, 192], strides = [1, 1]} : vector<8x256xf32> to vector<8x192xf32>
    %cst_15 = arith.constant 5.000000e-01 : f32
    %35 = vector.broadcast %cst_15 : f32 to vector<8x192xf32>
    %36 = arith.mulf %35, %34 : vector<8x192xf32>
    %37 = math.tanh %36 : vector<8x192xf32>
    %cst_16 = arith.constant 5.000000e-01 : f32
    %38 = vector.broadcast %cst_16 : f32 to vector<8x192xf32>
    %39 = arith.mulf %38, %37 : vector<8x192xf32>
    %cst_17 = arith.constant 5.000000e-01 : f32
    %40 = vector.broadcast %cst_17 : f32 to vector<8x192xf32>
    %41 = arith.addf %39, %40 : vector<8x192xf32>
    %42 = vector.extract_strided_slice %33 {offsets = [0, 192], sizes = [8, 64], strides = [1, 1]} : vector<8x256xf32> to vector<8x64xf32>
    %43 = math.tanh %42 : vector<8x64xf32>
    %44 = vector.extract_strided_slice %41 {offsets = [0, 64], sizes = [8, 64], strides = [1, 1]} : vector<8x192xf32> to vector<8x64xf32>
    %45 = arith.mulf %44, %25 : vector<8x64xf32>
    %46 = vector.extract_strided_slice %41 {offsets = [0, 0], sizes = [8, 64], strides = [1, 1]} : vector<8x192xf32> to vector<8x64xf32>
    %47 = arith.mulf %46, %43 : vector<8x64xf32>
    %48 = arith.addf %45, %47 : vector<8x64xf32>
    %49 = vector.extract_strided_slice %41 {offsets = [0, 128], sizes = [8, 64], strides = [1, 1]} : vector<8x192xf32> to vector<8x64xf32>
    %50 = math.tanh %48 : vector<8x64xf32>
    %51 = arith.mulf %49, %50 : vector<8x64xf32>
    %c2_i32 = arith.constant 2 : i32
    %52 = arith.index_cast %c2_i32 : i32 to index
    %c0_18 = arith.constant 0 : index
    %c0_19 = arith.constant 0 : index
    %53 = vector.load %arg2[%52, %c0_18, %c0_19] : memref<8x8x256xf32, #tpu.memory_space<vmem>>, vector<1x8x256xf32>
    %54 = vector.shape_cast %53 : vector<1x8x256xf32> to vector<8x256xf32>
    %cst_20 = arith.constant dense<0.000000e+00> : vector<8x256xf32>
    %55 = tpu.matmul %51, %3, %cst_20 {dimension_numbers = #tpu.dot_dimension_numbers<[1], [0], [0], [1], [0, 0, 1, 1], [], []>} : vector<8x64xf32>, vector<64x256xf32>, vector<8x256xf32> -> vector<8x256xf32>
    %56 = arith.addf %54, %55 : vector<8x256xf32>
    %57 = vector.extract_strided_slice %56 {offsets = [0, 0], sizes = [8, 192], strides = [1, 1]} : vector<8x256xf32> to vector<8x192xf32>
    %cst_21 = arith.constant 5.000000e-01 : f32
    %58 = vector.broadcast %cst_21 : f32 to vector<8x192xf32>
    %59 = arith.mulf %58, %57 : vector<8x192xf32>
    %60 = math.tanh %59 : vector<8x192xf32>
    %cst_22 = arith.constant 5.000000e-01 : f32
    %61 = vector.broadcast %cst_22 : f32 to vector<8x192xf32>
    %62 = arith.mulf %61, %60 : vector<8x192xf32>
    %cst_23 = arith.constant 5.000000e-01 : f32
    %63 = vector.broadcast %cst_23 : f32 to vector<8x192xf32>
    %64 = arith.addf %62, %63 : vector<8x192xf32>
    %65 = vector.extract_strided_slice %56 {offsets = [0, 192], sizes = [8, 64], strides = [1, 1]} : vector<8x256xf32> to vector<8x64xf32>
    %66 = math.tanh %65 : vector<8x64xf32>
    %67 = vector.extract_strided_slice %64 {offsets = [0, 64], sizes = [8, 64], strides = [1, 1]} : vector<8x192xf32> to vector<8x64xf32>
    %68 = arith.mulf %67, %48 : vector<8x64xf32>
    %69 = vector.extract_strided_slice %64 {offsets = [0, 0], sizes = [8, 64], strides = [1, 1]} : vector<8x192xf32> to vector<8x64xf32>
    %70 = arith.mulf %69, %66 : vector<8x64xf32>
    %71 = arith.addf %68, %70 : vector<8x64xf32>
    %72 = vector.extract_strided_slice %64 {offsets = [0, 128], sizes = [8, 64], strides = [1, 1]} : vector<8x192xf32> to vector<8x64xf32>
    %73 = math.tanh %71 : vector<8x64xf32>
    %74 = arith.mulf %72, %73 : vector<8x64xf32>
    %c3_i32 = arith.constant 3 : i32
    %75 = arith.index_cast %c3_i32 : i32 to index
    %c0_24 = arith.constant 0 : index
    %c0_25 = arith.constant 0 : index
    %76 = vector.load %arg2[%75, %c0_24, %c0_25] : memref<8x8x256xf32, #tpu.memory_space<vmem>>, vector<1x8x256xf32>
    %77 = vector.shape_cast %76 : vector<1x8x256xf32> to vector<8x256xf32>
    %cst_26 = arith.constant dense<0.000000e+00> : vector<8x256xf32>
    %78 = tpu.matmul %74, %3, %cst_26 {dimension_numbers = #tpu.dot_dimension_numbers<[1], [0], [0], [1], [0, 0, 1, 1], [], []>} : vector<8x64xf32>, vector<64x256xf32>, vector<8x256xf32> -> vector<8x256xf32>
    %79 = arith.addf %77, %78 : vector<8x256xf32>
    %80 = vector.extract_strided_slice %79 {offsets = [0, 0], sizes = [8, 192], strides = [1, 1]} : vector<8x256xf32> to vector<8x192xf32>
    %cst_27 = arith.constant 5.000000e-01 : f32
    %81 = vector.broadcast %cst_27 : f32 to vector<8x192xf32>
    %82 = arith.mulf %81, %80 : vector<8x192xf32>
    %83 = math.tanh %82 : vector<8x192xf32>
    %cst_28 = arith.constant 5.000000e-01 : f32
    %84 = vector.broadcast %cst_28 : f32 to vector<8x192xf32>
    %85 = arith.mulf %84, %83 : vector<8x192xf32>
    %cst_29 = arith.constant 5.000000e-01 : f32
    %86 = vector.broadcast %cst_29 : f32 to vector<8x192xf32>
    %87 = arith.addf %85, %86 : vector<8x192xf32>
    %88 = vector.extract_strided_slice %79 {offsets = [0, 192], sizes = [8, 64], strides = [1, 1]} : vector<8x256xf32> to vector<8x64xf32>
    %89 = math.tanh %88 : vector<8x64xf32>
    %90 = vector.extract_strided_slice %87 {offsets = [0, 64], sizes = [8, 64], strides = [1, 1]} : vector<8x192xf32> to vector<8x64xf32>
    %91 = arith.mulf %90, %71 : vector<8x64xf32>
    %92 = vector.extract_strided_slice %87 {offsets = [0, 0], sizes = [8, 64], strides = [1, 1]} : vector<8x192xf32> to vector<8x64xf32>
    %93 = arith.mulf %92, %89 : vector<8x64xf32>
    %94 = arith.addf %91, %93 : vector<8x64xf32>
    %95 = vector.extract_strided_slice %87 {offsets = [0, 128], sizes = [8, 64], strides = [1, 1]} : vector<8x192xf32> to vector<8x64xf32>
    %96 = math.tanh %94 : vector<8x64xf32>
    %97 = arith.mulf %95, %96 : vector<8x64xf32>
    %c4_i32 = arith.constant 4 : i32
    %98 = arith.index_cast %c4_i32 : i32 to index
    %c0_30 = arith.constant 0 : index
    %c0_31 = arith.constant 0 : index
    %99 = vector.load %arg2[%98, %c0_30, %c0_31] : memref<8x8x256xf32, #tpu.memory_space<vmem>>, vector<1x8x256xf32>
    %100 = vector.shape_cast %99 : vector<1x8x256xf32> to vector<8x256xf32>
    %cst_32 = arith.constant dense<0.000000e+00> : vector<8x256xf32>
    %101 = tpu.matmul %97, %3, %cst_32 {dimension_numbers = #tpu.dot_dimension_numbers<[1], [0], [0], [1], [0, 0, 1, 1], [], []>} : vector<8x64xf32>, vector<64x256xf32>, vector<8x256xf32> -> vector<8x256xf32>
    %102 = arith.addf %100, %101 : vector<8x256xf32>
    %103 = vector.extract_strided_slice %102 {offsets = [0, 0], sizes = [8, 192], strides = [1, 1]} : vector<8x256xf32> to vector<8x192xf32>
    %cst_33 = arith.constant 5.000000e-01 : f32
    %104 = vector.broadcast %cst_33 : f32 to vector<8x192xf32>
    %105 = arith.mulf %104, %103 : vector<8x192xf32>
    %106 = math.tanh %105 : vector<8x192xf32>
    %cst_34 = arith.constant 5.000000e-01 : f32
    %107 = vector.broadcast %cst_34 : f32 to vector<8x192xf32>
    %108 = arith.mulf %107, %106 : vector<8x192xf32>
    %cst_35 = arith.constant 5.000000e-01 : f32
    %109 = vector.broadcast %cst_35 : f32 to vector<8x192xf32>
    %110 = arith.addf %108, %109 : vector<8x192xf32>
    %111 = vector.extract_strided_slice %102 {offsets = [0, 192], sizes = [8, 64], strides = [1, 1]} : vector<8x256xf32> to vector<8x64xf32>
    %112 = math.tanh %111 : vector<8x64xf32>
    %113 = vector.extract_strided_slice %110 {offsets = [0, 64], sizes = [8, 64], strides = [1, 1]} : vector<8x192xf32> to vector<8x64xf32>
    %114 = arith.mulf %113, %94 : vector<8x64xf32>
    %115 = vector.extract_strided_slice %110 {offsets = [0, 0], sizes = [8, 64], strides = [1, 1]} : vector<8x192xf32> to vector<8x64xf32>
    %116 = arith.mulf %115, %112 : vector<8x64xf32>
    %117 = arith.addf %114, %116 : vector<8x64xf32>
    %118 = vector.extract_strided_slice %110 {offsets = [0, 128], sizes = [8, 64], strides = [1, 1]} : vector<8x192xf32> to vector<8x64xf32>
    %119 = math.tanh %117 : vector<8x64xf32>
    %120 = arith.mulf %118, %119 : vector<8x64xf32>
    %c5_i32 = arith.constant 5 : i32
    %121 = arith.index_cast %c5_i32 : i32 to index
    %c0_36 = arith.constant 0 : index
    %c0_37 = arith.constant 0 : index
    %122 = vector.load %arg2[%121, %c0_36, %c0_37] : memref<8x8x256xf32, #tpu.memory_space<vmem>>, vector<1x8x256xf32>
    %123 = vector.shape_cast %122 : vector<1x8x256xf32> to vector<8x256xf32>
    %cst_38 = arith.constant dense<0.000000e+00> : vector<8x256xf32>
    %124 = tpu.matmul %120, %3, %cst_38 {dimension_numbers = #tpu.dot_dimension_numbers<[1], [0], [0], [1], [0, 0, 1, 1], [], []>} : vector<8x64xf32>, vector<64x256xf32>, vector<8x256xf32> -> vector<8x256xf32>
    %125 = arith.addf %123, %124 : vector<8x256xf32>
    %126 = vector.extract_strided_slice %125 {offsets = [0, 0], sizes = [8, 192], strides = [1, 1]} : vector<8x256xf32> to vector<8x192xf32>
    %cst_39 = arith.constant 5.000000e-01 : f32
    %127 = vector.broadcast %cst_39 : f32 to vector<8x192xf32>
    %128 = arith.mulf %127, %126 : vector<8x192xf32>
    %129 = math.tanh %128 : vector<8x192xf32>
    %cst_40 = arith.constant 5.000000e-01 : f32
    %130 = vector.broadcast %cst_40 : f32 to vector<8x192xf32>
    %131 = arith.mulf %130, %129 : vector<8x192xf32>
    %cst_41 = arith.constant 5.000000e-01 : f32
    %132 = vector.broadcast %cst_41 : f32 to vector<8x192xf32>
    %133 = arith.addf %131, %132 : vector<8x192xf32>
    %134 = vector.extract_strided_slice %125 {offsets = [0, 192], sizes = [8, 64], strides = [1, 1]} : vector<8x256xf32> to vector<8x64xf32>
    %135 = math.tanh %134 : vector<8x64xf32>
    %136 = vector.extract_strided_slice %133 {offsets = [0, 64], sizes = [8, 64], strides = [1, 1]} : vector<8x192xf32> to vector<8x64xf32>
    %137 = arith.mulf %136, %117 : vector<8x64xf32>
    %138 = vector.extract_strided_slice %133 {offsets = [0, 0], sizes = [8, 64], strides = [1, 1]} : vector<8x192xf32> to vector<8x64xf32>
    %139 = arith.mulf %138, %135 : vector<8x64xf32>
    %140 = arith.addf %137, %139 : vector<8x64xf32>
    %141 = vector.extract_strided_slice %133 {offsets = [0, 128], sizes = [8, 64], strides = [1, 1]} : vector<8x192xf32> to vector<8x64xf32>
    %142 = math.tanh %140 : vector<8x64xf32>
    %143 = arith.mulf %141, %142 : vector<8x64xf32>
    %c6_i32 = arith.constant 6 : i32
    %144 = arith.index_cast %c6_i32 : i32 to index
    %c0_42 = arith.constant 0 : index
    %c0_43 = arith.constant 0 : index
    %145 = vector.load %arg2[%144, %c0_42, %c0_43] : memref<8x8x256xf32, #tpu.memory_space<vmem>>, vector<1x8x256xf32>
    %146 = vector.shape_cast %145 : vector<1x8x256xf32> to vector<8x256xf32>
    %cst_44 = arith.constant dense<0.000000e+00> : vector<8x256xf32>
    %147 = tpu.matmul %143, %3, %cst_44 {dimension_numbers = #tpu.dot_dimension_numbers<[1], [0], [0], [1], [0, 0, 1, 1], [], []>} : vector<8x64xf32>, vector<64x256xf32>, vector<8x256xf32> -> vector<8x256xf32>
    %148 = arith.addf %146, %147 : vector<8x256xf32>
    %149 = vector.extract_strided_slice %148 {offsets = [0, 0], sizes = [8, 192], strides = [1, 1]} : vector<8x256xf32> to vector<8x192xf32>
    %cst_45 = arith.constant 5.000000e-01 : f32
    %150 = vector.broadcast %cst_45 : f32 to vector<8x192xf32>
    %151 = arith.mulf %150, %149 : vector<8x192xf32>
    %152 = math.tanh %151 : vector<8x192xf32>
    %cst_46 = arith.constant 5.000000e-01 : f32
    %153 = vector.broadcast %cst_46 : f32 to vector<8x192xf32>
    %154 = arith.mulf %153, %152 : vector<8x192xf32>
    %cst_47 = arith.constant 5.000000e-01 : f32
    %155 = vector.broadcast %cst_47 : f32 to vector<8x192xf32>
    %156 = arith.addf %154, %155 : vector<8x192xf32>
    %157 = vector.extract_strided_slice %148 {offsets = [0, 192], sizes = [8, 64], strides = [1, 1]} : vector<8x256xf32> to vector<8x64xf32>
    %158 = math.tanh %157 : vector<8x64xf32>
    %159 = vector.extract_strided_slice %156 {offsets = [0, 64], sizes = [8, 64], strides = [1, 1]} : vector<8x192xf32> to vector<8x64xf32>
    %160 = arith.mulf %159, %140 : vector<8x64xf32>
    %161 = vector.extract_strided_slice %156 {offsets = [0, 0], sizes = [8, 64], strides = [1, 1]} : vector<8x192xf32> to vector<8x64xf32>
    %162 = arith.mulf %161, %158 : vector<8x64xf32>
    %163 = arith.addf %160, %162 : vector<8x64xf32>
    %164 = vector.extract_strided_slice %156 {offsets = [0, 128], sizes = [8, 64], strides = [1, 1]} : vector<8x192xf32> to vector<8x64xf32>
    %165 = math.tanh %163 : vector<8x64xf32>
    %166 = arith.mulf %164, %165 : vector<8x64xf32>
    %c7_i32 = arith.constant 7 : i32
    %167 = arith.index_cast %c7_i32 : i32 to index
    %c0_48 = arith.constant 0 : index
    %c0_49 = arith.constant 0 : index
    %168 = vector.load %arg2[%167, %c0_48, %c0_49] : memref<8x8x256xf32, #tpu.memory_space<vmem>>, vector<1x8x256xf32>
    %169 = vector.shape_cast %168 : vector<1x8x256xf32> to vector<8x256xf32>
    %cst_50 = arith.constant dense<0.000000e+00> : vector<8x256xf32>
    %170 = tpu.matmul %166, %3, %cst_50 {dimension_numbers = #tpu.dot_dimension_numbers<[1], [0], [0], [1], [0, 0, 1, 1], [], []>} : vector<8x64xf32>, vector<64x256xf32>, vector<8x256xf32> -> vector<8x256xf32>
    %171 = arith.addf %169, %170 : vector<8x256xf32>
    %172 = vector.extract_strided_slice %171 {offsets = [0, 0], sizes = [8, 192], strides = [1, 1]} : vector<8x256xf32> to vector<8x192xf32>
    %cst_51 = arith.constant 5.000000e-01 : f32
    %173 = vector.broadcast %cst_51 : f32 to vector<8x192xf32>
    %174 = arith.mulf %173, %172 : vector<8x192xf32>
    %175 = math.tanh %174 : vector<8x192xf32>
    %cst_52 = arith.constant 5.000000e-01 : f32
    %176 = vector.broadcast %cst_52 : f32 to vector<8x192xf32>
    %177 = arith.mulf %176, %175 : vector<8x192xf32>
    %cst_53 = arith.constant 5.000000e-01 : f32
    %178 = vector.broadcast %cst_53 : f32 to vector<8x192xf32>
    %179 = arith.addf %177, %178 : vector<8x192xf32>
    %180 = vector.extract_strided_slice %171 {offsets = [0, 192], sizes = [8, 64], strides = [1, 1]} : vector<8x256xf32> to vector<8x64xf32>
    %181 = math.tanh %180 : vector<8x64xf32>
    %182 = vector.extract_strided_slice %179 {offsets = [0, 64], sizes = [8, 64], strides = [1, 1]} : vector<8x192xf32> to vector<8x64xf32>
    %183 = arith.mulf %182, %163 : vector<8x64xf32>
    %184 = vector.extract_strided_slice %179 {offsets = [0, 0], sizes = [8, 64], strides = [1, 1]} : vector<8x192xf32> to vector<8x64xf32>
    %185 = arith.mulf %184, %181 : vector<8x64xf32>
    %186 = arith.addf %183, %185 : vector<8x64xf32>
    %187 = vector.extract_strided_slice %179 {offsets = [0, 128], sizes = [8, 64], strides = [1, 1]} : vector<8x192xf32> to vector<8x64xf32>
    %188 = math.tanh %186 : vector<8x64xf32>
    %189 = arith.mulf %187, %188 : vector<8x64xf32>
    %c8_i32 = arith.constant 8 : i32
    %c0_54 = arith.constant 0 : index
    %c0_55 = arith.constant 0 : index
    %190 = vector.load %arg5[%c0_54, %c0_55] : memref<8x64xf32, #tpu.memory_space<vmem>>, vector<8x64xf32>
    tpu.vector_store %arg5[%c0_54, %c0_55], %189 {strides = array<i32>} : memref<8x64xf32, #tpu.memory_space<vmem>>, vector<8x64xf32>,
    %c0_56 = arith.constant 0 : index
    %c0_57 = arith.constant 0 : index
    %191 = vector.load %arg6[%c0_56, %c0_57] : memref<8x64xf32, #tpu.memory_space<vmem>>, vector<8x64xf32>
    tpu.vector_store %arg6[%c0_56, %c0_57], %186 {strides = array<i32>} : memref<8x64xf32, #tpu.memory_space<vmem>>, vector<8x64xf32>,
    %c0_i32_58 = arith.constant 0 : i32
    %192 = arith.cmpi eq, %arg1, %c0_i32_58 : i32
    %193 = arith.extui %192 : i1 to i32
    %c0_i32_59 = arith.constant 0 : i32
    %194 = arith.cmpi ne, %193, %c0_i32_59 : i32
    scf.if %194 {
      %c0_60 = arith.constant 0 : index
      %c0_61 = arith.constant 0 : index
      %195 = vector.load %arg4[%c0_60, %c0_61] : memref<8x64xf32, #tpu.memory_space<vmem>>, vector<8x64xf32>
      tpu.vector_store %arg4[%c0_60, %c0_61], %189 {strides = array<i32>} : memref<8x64xf32, #tpu.memory_space<vmem>>, vector<8x64xf32>,
    } else {
    }
    return
  }
  func.func @transform_0(%arg0: i32, %arg1: i32) -> (i32, i32, i32) {
    %c0_i32 = arith.constant 0 : i32
    %c0_i32_0 = arith.constant 0 : i32
    return %arg1, %arg0, %c0_i32 : i32, i32, i32
  }
  func.func @transform_1(%arg0: i32, %arg1: i32) -> (i32, i32) {
    %c0_i32 = arith.constant 0 : i32
    %c0_i32_0 = arith.constant 0 : i32
    %c0_i32_1 = arith.constant 0 : i32
    return %c0_i32, %c0_i32_0 : i32, i32
  }
  func.func @transform_2(%arg0: i32, %arg1: i32) -> (i32, i32) {
    %c0_i32 = arith.constant 0 : i32
    %c0_i32_0 = arith.constant 0 : i32
    return %arg0, %c0_i32 : i32, i32
  }
}

</mosaic_0001>

<llo_original>
// kernel: tpu_custom_call.1
$region0: #{tpu_custom_call.1}
  #allocation0 [shape = 'u32[]', space=smem, size = 0x4, offset = 0x4, fixed_abs, tag = 'smem constant byte address 0x4 - core index']
  #allocation1 [shape = 'u32[144,128]{1,0:T(1,128)}', space=vmem, size = 0x12000, scoped, tag = 'internal scratch']
  #allocation2 [shape = 'f32[8,64]{1,0:T(8,128)}', space=vmem, size = 0x1000, scoped, tag = 'scratch operand']
  #allocation3 [shape = 'f32[8,64]{1,0:T(8,128)}', space=vmem, size = 0x1000, scoped, tag = 'scratch operand']
  %s0 = inlined_call_operand.hbm [shape: f32[8,8,256], index: 0, kind: input, shape index: {}]
  %s1 = inlined_call_operand.hbm [shape: f32[64,256], index: 1, kind: input, shape index: {}]
  %s2 = inlined_call_operand.hbm [shape: f32[8,64], index: 2, kind: output, shape index: {}]
  %s3 = sld [smem:[#allocation0]]
  $region34: #{tpu_custom_call.1} parent=0
    _
  %s5 = ssub.s32 1, %s3
  %s6 = scalar_select 0, %s5, %s3
  $region1: #{tpu_custom_call.1} parent=0
    #allocation4 [shape = 'u8[65536]{0}', space=vmem, size = 0x10000, scoped, tag = 'input window, operand 0, single buffered']
    #allocation5 [shape = 's32[1]{0}', space=sflag, size = 0x4, scoped, tag = 'scoped memory for tpu_custom_call.1']
    #allocation6 [shape = 's32[1]{0}', space=sflag, size = 0x4, scoped, tag = 'scoped memory for tpu_custom_call.1']
    #allocation7 [shape = 'u8[65536]{0}', space=vmem, size = 0x10000, scoped, tag = 'input window, operand 1, single buffered']
    #allocation8 [shape = 's32[1]{0}', space=sflag, size = 0x4, scoped, tag = 'scoped memory for tpu_custom_call.1']
    #allocation9 [shape = 'u8[4096]{0}', space=vmem, size = 0x1000, scoped, tag = 'output window, operand 0, single buffered']
    %7 = vsyncpa [#allocation5], 0
    %8 = vsyncpa [#allocation8], 0
    %9 = vsyncpa [#allocation6], 0
    // Predicated region
    $region2: #{tpu_custom_call.1} parent=1 // pred_check
      _
    $region3: #{tpu_custom_call.1} parent=1 // pred_check_branch
      %11 = sbr.rel (0) target = $region5
    $region4: #{tpu_custom_call.1} parent=1 // pred_region
      %s13 = ssub.s32 2048, 2048
      %14 = vsyncadd [#allocation5], %s13
      %s15 = sshll.u32 [#allocation4], 4
      %s16 = int_to_ptr.vmem [resolvable:$true] %s15
      %21 = dma.hbm_to_vmem [thread:$0]  %s0, 2048, %s16, [#allocation5], 256, 256, 16
    $region5: #{tpu_custom_call.1} parent=1 // pred_fallthru
      _
    // Predicated region
    $region6: #{tpu_custom_call.1} parent=1 // pred_check
      _
    $region7: #{tpu_custom_call.1} parent=1 // pred_check_branch
      %23 = sbr.rel (0) target = $region9
    $region8: #{tpu_custom_call.1} parent=1 // pred_region
      %s25 = ssub.s32 2048, 2048
      %26 = vsyncadd [#allocation8], %s25
      %s27 = sshll.u32 [#allocation7], 4
      %s28 = int_to_ptr.vmem [resolvable:$true] %s27
      %33 = dma.hbm_to_vmem [thread:$0]  %s1, 2048, %s28, [#allocation8], 256, 256, 16
    $region9: #{tpu_custom_call.1} parent=1 // pred_fallthru
      _
    // Predicated region
    $region10: #{tpu_custom_call.1} parent=1 // pred_check
      _
    $region11: #{tpu_custom_call.1} parent=1 // pred_check_branch
      %35 = sbr.rel (0) target = $region13
    $region12: #{tpu_custom_call.1} parent=1 // pred_region
      %36 = dma.done [#allocation5], 2048
    $region13: #{tpu_custom_call.1} parent=1 // pred_fallthru
      _
    // Predicated region
    $region14: #{tpu_custom_call.1} parent=1 // pred_check
      _
    $region15: #{tpu_custom_call.1} parent=1 // pred_check_branch
      %38 = sbr.rel (0) target = $region17
    $region16: #{tpu_custom_call.1} parent=1 // pred_region
      %39 = dma.done [#allocation8], 2048
    $region17: #{tpu_custom_call.1} parent=1 // pred_fallthru
      _
    %p40 = scmp.eq.s32.totalorder 0, 0
    // Predicated region
    $region18: #{tpu_custom_call.1} parent=1 // pred_check
      %p41 = pneg %p40
    $region19: #{tpu_custom_call.1} parent=1 // pred_check_branch
      %43 = sbr.rel (%p41) target = $region21
    $region20: #{tpu_custom_call.1} parent=1 // pred_region
      %vm44 = vcmask 523264
      %45 = vst.msk [vmem:[#allocation2] sm:$0xff] %vm44, 0.0
      %46 = vst.msk [vmem:[#allocation3] sm:$0xff] %vm44, 0.0
    $region21: #{tpu_custom_call.1} parent=1 // pred_fallthru
      _
    %v47 = vld [vmem:[#allocation7] sm:$0xff]
    %v48 = vld [vmem:[#allocation7 + $0x8] sm:$0xff]
    %v49 = vld [vmem:[#allocation7 + $0x10] sm:$0xff]
    %v50 = vld [vmem:[#allocation7 + $0x18] sm:$0xff]
    %v51 = vld [vmem:[#allocation7 + $0x20] sm:$0xff]
    %v52 = vld [vmem:[#allocation7 + $0x28] sm:$0xff]
    %v53 = vld [vmem:[#allocation7 + $0x30] sm:$0xff]
    %v54 = vld [vmem:[#allocation7 + $0x38] sm:$0xff]
    %v55 = vld [vmem:[#allocation7 + $0x40] sm:$0xff]
    %v56 = vld [vmem:[#allocation7 + $0x48] sm:$0xff]
    %v57 = vld [vmem:[#allocation7 + $0x50] sm:$0xff]
    %v58 = vld [vmem:[#allocation7 + $0x58] sm:$0xff]
    %v59 = vld [vmem:[#allocation7 + $0x60] sm:$0xff]
    %v60 = vld [vmem:[#allocation7 + $0x68] sm:$0xff]
    %v61 = vld [vmem:[#allocation7 + $0x70] sm:$0xff]
    %v62 = vld [vmem:[#allocation7 + $0x78] sm:$0xff]
    %v63 = vld [vmem:[#allocation2] sm:$0xff]
    %v64 = vld [vmem:[#allocation3] sm:$0xff]
    %v65 = vld [vmem:[#allocation4] sm:$0xff]
    %v66 = vld [vmem:[#allocation4 + $0x8] sm:$0xff]
    %vm67 = vcmask 523264
    %v69 = vsel %vm67, %v63, 0
    %71 = vmatprep.subr.mxu0 0.0
    %72 = vmatpush1.msra.mxu0 0.0
    %73 = vmatprep.subr.mxu0 0.0
    %74 = vmatpush1.msra.mxu0 0.0
    %75 = vmatprep.subr.mxu0 0.0
    %76 = vmatpush1.msra.mxu0 0.0
    %77 = vmatprep.subr.mxu0 0.0
    %78 = vmatpush1.msra.mxu0 0.0
    %79 = vmatprep.subr.mxu0 0.0
    %80 = vmatpush1.msra.mxu0 0.0
    %81 = vmatprep.subr.mxu0 0.0
    %82 = vmatpush1.msra.mxu0 0.0
    %83 = vmatprep.subr.mxu0 0.0
    %84 = vmatpush1.msra.mxu0 0.0
    %85 = vmatprep.subr.mxu0 0.0
    %86 = vmatpush1.msra.mxu0 0.0
    %87 = vmatprep.subr.mxu0 %v62
    %88 = vmatpush1.msra.mxu0 %v61
    %89 = vmatprep.subr.mxu0 %v60
    %90 = vmatpush1.msra.mxu0 %v59
    %91 = vmatprep.subr.mxu0 %v58
    %92 = vmatpush1.msra.mxu0 %v57
    %93 = vmatprep.subr.mxu0 %v56
    %94 = vmatpush1.msra.mxu0 %v55
    %95 = vmatprep.subr.mxu0 %v54
    %96 = vmatpush1.msra.mxu0 %v53
    %97 = vmatprep.subr.mxu0 %v52
    %98 = vmatpush1.msra.mxu0 %v51
    %99 = vmatprep.subr.mxu0 %v50
    %100 = vmatpush1.msra.mxu0 %v49
    %101 = vmatprep.subr.mxu0 %v48
    %102 = vmatpush1.msra.mxu0 %v47
    %103 = vmatprep.subr.mxu0 0.0
    %104 = vmatpush2.msra.mxu0 0.0
    %105 = vmatprep.subr.mxu0 0.0
    %106 = vmatpush2.msra.mxu0 0.0
    %107 = vmatprep.subr.mxu0 0.0
    %108 = vmatpush2.msra.mxu0 0.0
    %109 = vmatprep.subr.mxu0 0.0
    %110 = vmatpush2.msra.mxu0 0.0
    %111 = vmatprep.subr.mxu0 0.0
    %112 = vmatpush2.msra.mxu0 0.0
    %113 = vmatprep.subr.mxu0 0.0
    %114 = vmatpush2.msra.mxu0 0.0
    %115 = vmatprep.subr.mxu0 0.0
    %116 = vmatpush2.msra.mxu0 0.0
    %117 = vmatprep.subr.mxu0 0.0
    %118 = vmatpush2.msra.mxu0 0.0
    %119 = vmatprep.subr.mxu0 0.0
    %120 = vmatpush2.msra.mxu0 0.0
    %121 = vmatprep.subr.mxu0 0.0
    %122 = vmatpush2.msra.mxu0 0.0
    %123 = vmatprep.subr.mxu0 0.0
    %124 = vmatpush2.msra.mxu0 0.0
    %125 = vmatprep.subr.mxu0 0.0
    %126 = vmatpush2.msra.mxu0 0.0
    %127 = vmatprep.subr.mxu0 0.0
    %128 = vmatpush2.msra.mxu0 0.0
    %129 = vmatprep.subr.mxu0 0.0
    %130 = vmatpush2.msra.mxu0 0.0
    %131 = vmatprep.subr.mxu0 0.0
    %132 = vmatpush2.msra.mxu0 0.0
    %133 = vmatprep.subr.mxu0 0.0
    %134 = vmatpush2.msra.mxu0 0.0
    %135 = vmatprep.mubr.f32.mxu0 0.0
    %136 = vmatmul.mubr.f32.gmra.mxu0 %v69
    %v137 = vpop.f32.mrf.mxu0
    %v138 = vadd.f32 0.0, %v137
    %v139 = vpop.f32.mrf.mxu0
    %v140 = vadd.f32 0.0, %v139
    %141 = vdwg.mxu0
    %v142 = vadd.f32 %v65, %v138
    %v143 = vadd.f32 %v66, %v140
    %v144 = vmul.f32 %v142, 0.5
    %v145 = vmul.f32 %v143, 0.5
    %v146 = vtanh.pop %v144
    %v147 = vtanh.pop %v145
    %v148 = vmul.f32 %v146, 0.5
    %v149 = vmul.f32 %v147, 0.5
    %v150 = vadd.f32 %v148, 0.5
    %v151 = vadd.f32 %v149, 0.5
    %v152 = vtanh.pop %v143
    %154 = vrot.lane.b32.xlu0 %v64, 64
    %v155 = vpop.permute.xlu0 %154
    %v157 = vmul.f32 %v150, %v155
    %159 = vrot.lane.b32.xlu0 %v152, 64
    %v160 = vpop.permute.xlu0 %159
    %v162 = vmul.f32 %v150, %v160
    %164 = vrot.lane.b32.xlu0 %v162, 64
    %v165 = vpop.permute.xlu0 %164
    %v167 = vadd.f32 %v157, %v165
    %v168 = vtanh.pop %v167
    %170 = vrot.lane.b32.xlu0 %v168, 64
    %v171 = vpop.permute.xlu0 %170
    %v173 = vmul.f32 %v151, %v171
    %s174 = scalar_lea.vmem [#allocation4], 16
    %v175 = vld [vmem:[%s174] sm:$0xff]
    %v176 = vld [vmem:[%s174 + $0x8] sm:$0xff]
    %v178 = vsel %vm67, %v173, 0
    %180 = vmatprep.subr.mxu0 0.0
    %181 = vmatpush1.msra.mxu0 0.0
    %182 = vmatprep.subr.mxu0 0.0
    %183 = vmatpush1.msra.mxu0 0.0
    %184 = vmatprep.subr.mxu0 0.0
    %185 = vmatpush1.msra.mxu0 0.0
    %186 = vmatprep.subr.mxu0 0.0
    %187 = vmatpush1.msra.mxu0 0.0
    %188 = vmatprep.subr.mxu0 0.0
    %189 = vmatpush1.msra.mxu0 0.0
    %190 = vmatprep.subr.mxu0 0.0
    %191 = vmatpush1.msra.mxu0 0.0
    %192 = vmatprep.subr.mxu0 0.0
    %193 = vmatpush1.msra.mxu0 0.0
    %194 = vmatprep.subr.mxu0 0.0
    %195 = vmatpush1.msra.mxu0 0.0
    %196 = vmatprep.subr.mxu0 %v62
    %197 = vmatpush1.msra.mxu0 %v61
    %198 = vmatprep.subr.mxu0 %v60
    %199 = vmatpush1.msra.mxu0 %v59
    %200 = vmatprep.subr.mxu0 %v58
    %201 = vmatpush1.msra.mxu0 %v57
    %202 = vmatprep.subr.mxu0 %v56
    %203 = vmatpush1.msra.mxu0 %v55
    %204 = vmatprep.subr.mxu0 %v54
    %205 = vmatpush1.msra.mxu0 %v53
    %206 = vmatprep.subr.mxu0 %v52
    %207 = vmatpush1.msra.mxu0 %v51
    %208 = vmatprep.subr.mxu0 %v50
    %209 = vmatpush1.msra.mxu0 %v49
    %210 = vmatprep.subr.mxu0 %v48
    %211 = vmatpush1.msra.mxu0 %v47
    %212 = vmatprep.subr.mxu0 0.0
    %213 = vmatpush2.msra.mxu0 0.0
    %214 = vmatprep.subr.mxu0 0.0
    %215 = vmatpush2.msra.mxu0 0.0
    %216 = vmatprep.subr.mxu0 0.0
    %217 = vmatpush2.msra.mxu0 0.0
    %218 = vmatprep.subr.mxu0 0.0
    %219 = vmatpush2.msra.mxu0 0.0
    %220 = vmatprep.subr.mxu0 0.0
    %221 = vmatpush2.msra.mxu0 0.0
    %222 = vmatprep.subr.mxu0 0.0
    %223 = vmatpush2.msra.mxu0 0.0
    %224 = vmatprep.subr.mxu0 0.0
    %225 = vmatpush2.msra.mxu0 0.0
    %226 = vmatprep.subr.mxu0 0.0
    %227 = vmatpush2.msra.mxu0 0.0
    %228 = vmatprep.subr.mxu0 0.0
    %229 = vmatpush2.msra.mxu0 0.0
    %230 = vmatprep.subr.mxu0 0.0
    %231 = vmatpush2.msra.mxu0 0.0
    %232 = vmatprep.subr.mxu0 0.0
    %233 = vmatpush2.msra.mxu0 0.0
    %234 = vmatprep.subr.mxu0 0.0
    %235 = vmatpush2.msra.mxu0 0.0
    %236 = vmatprep.subr.mxu0 0.0
    %237 = vmatpush2.msra.mxu0 0.0
    %238 = vmatprep.subr.mxu0 0.0
    %239 = vmatpush2.msra.mxu0 0.0
    %240 = vmatprep.subr.mxu0 0.0
    %241 = vmatpush2.msra.mxu0 0.0
    %242 = vmatprep.subr.mxu0 0.0
    %243 = vmatpush2.msra.mxu0 0.0
    %244 = vmatprep.mubr.f32.mxu0 0.0
    %245 = vmatmul.mubr.f32.gmra.mxu0 %v178
    %v246 = vpop.f32.mrf.mxu0
    %v247 = vadd.f32 0.0, %v246
    %v248 = vpop.f32.mrf.mxu0
    %v249 = vadd.f32 0.0, %v248
    %250 = vdwg.mxu0
    %v251 = vadd.f32 %v175, %v247
    %v252 = vadd.f32 %v176, %v249
    %v253 = vmul.f32 %v251, 0.5
    %v254 = vmul.f32 %v252, 0.5
    %v255 = vtanh.pop %v253
    %v256 = vtanh.pop %v254
    %v257 = vmul.f32 %v255, 0.5
    %v258 = vmul.f32 %v256, 0.5
    %v259 = vadd.f32 %v257, 0.5
    %v260 = vadd.f32 %v258, 0.5
    %v261 = vtanh.pop %v252
    %v262 = vmul.f32 %v259, %v167
    %264 = vrot.lane.b32.xlu0 %v261, 64
    %v265 = vpop.permute.xlu0 %264
    %v267 = vmul.f32 %v259, %v265
    %269 = vrot.lane.b32.xlu0 %v267, 64
    %v270 = vpop.permute.xlu0 %269
    %v272 = vadd.f32 %v262, %v270
    %v273 = vtanh.pop %v272
    %275 = vrot.lane.b32.xlu0 %v273, 64
    %v276 = vpop.permute.xlu0 %275
    %v278 = vmul.f32 %v260, %v276
    %s279 = scalar_lea.vmem [#allocation4], 32
    %v280 = vld [vmem:[%s279] sm:$0xff]
    %v281 = vld [vmem:[%s279 + $0x8] sm:$0xff]
    %v283 = vsel %vm67, %v278, 0
    %285 = vmatprep.subr.mxu0 0.0
    %286 = vmatpush1.msra.mxu0 0.0
    %287 = vmatprep.subr.mxu0 0.0
    %288 = vmatpush1.msra.mxu0 0.0
    %289 = vmatprep.subr.mxu0 0.0
    %290 = vmatpush1.msra.mxu0 0.0
    %291 = vmatprep.subr.mxu0 0.0
    %292 = vmatpush1.msra.mxu0 0.0
    %293 = vmatprep.subr.mxu0 0.0
    %294 = vmatpush1.msra.mxu0 0.0
    %295 = vmatprep.subr.mxu0 0.0
    %296 = vmatpush1.msra.mxu0 0.0
    %297 = vmatprep.subr.mxu0 0.0
    %298 = vmatpush1.msra.mxu0 0.0
    %299 = vmatprep.subr.mxu0 0.0
    %300 = vmatpush1.msra.mxu0 0.0
    %301 = vmatprep.subr.mxu0 %v62
    %302 = vmatpush1.msra.mxu0 %v61
    %303 = vmatprep.subr.mxu0 %v60
    %304 = vmatpush1.msra.mxu0 %v59
    %305 = vmatprep.subr.mxu0 %v58
    %306 = vmatpush1.msra.mxu0 %v57
    %307 = vmatprep.subr.mxu0 %v56
    %308 = vmatpush1.msra.mxu0 %v55
    %309 = vmatprep.subr.mxu0 %v54
    %310 = vmatpush1.msra.mxu0 %v53
    %311 = vmatprep.subr.mxu0 %v52
    %312 = vmatpush1.msra.mxu0 %v51
    %313 = vmatprep.subr.mxu0 %v50
    %314 = vmatpush1.msra.mxu0 %v49
    %315 = vmatprep.subr.mxu0 %v48
    %316 = vmatpush1.msra.mxu0 %v47
    %317 = vmatprep.subr.mxu0 0.0
    %318 = vmatpush2.msra.mxu0 0.0
    %319 = vmatprep.subr.mxu0 0.0
    %320 = vmatpush2.msra.mxu0 0.0
    %321 = vmatprep.subr.mxu0 0.0
    %322 = vmatpush2.msra.mxu0 0.0
    %323 = vmatprep.subr.mxu0 0.0
    %324 = vmatpush2.msra.mxu0 0.0
    %325 = vmatprep.subr.mxu0 0.0
    %326 = vmatpush2.msra.mxu0 0.0
    %327 = vmatprep.subr.mxu0 0.0
    %328 = vmatpush2.msra.mxu0 0.0
    %329 = vmatprep.subr.mxu0 0.0
    %330 = vmatpush2.msra.mxu0 0.0
    %331 = vmatprep.subr.mxu0 0.0
    %332 = vmatpush2.msra.mxu0 0.0
    %333 = vmatprep.subr.mxu0 0.0
    %334 = vmatpush2.msra.mxu0 0.0
    %335 = vmatprep.subr.mxu0 0.0
    %336 = vmatpush2.msra.mxu0 0.0
    %337 = vmatprep.subr.mxu0 0.0
    %338 = vmatpush2.msra.mxu0 0.0
    %339 = vmatprep.subr.mxu0 0.0
    %340 = vmatpush2.msra.mxu0 0.0
    %341 = vmatprep.subr.mxu0 0.0
    %342 = vmatpush2.msra.mxu0 0.0
    %343 = vmatprep.subr.mxu0 0.0
    %344 = vmatpush2.msra.mxu0 0.0
    %345 = vmatprep.subr.mxu0 0.0
    %346 = vmatpush2.msra.mxu0 0.0
    %347 = vmatprep.subr.mxu0 0.0
    %348 = vmatpush2.msra.mxu0 0.0
    %349 = vmatprep.mubr.f32.mxu0 0.0
    %350 = vmatmul.mubr.f32.gmra.mxu0 %v283
    %v351 = vpop.f32.mrf.mxu0
    %v352 = vadd.f32 0.0, %v351
    %v353 = vpop.f32.mrf.mxu0
    %v354 = vadd.f32 0.0, %v353
    %355 = vdwg.mxu0
    %v356 = vadd.f32 %v280, %v352
    %v357 = vadd.f32 %v281, %v354
    %v358 = vmul.f32 %v356, 0.5
    %v359 = vmul.f32 %v357, 0.5
    %v360 = vtanh.pop %v358
    %v361 = vtanh.pop %v359
    %v362 = vmul.f32 %v360, 0.5
    %v363 = vmul.f32 %v361, 0.5
    %v364 = vadd.f32 %v362, 0.5
    %v365 = vadd.f32 %v363, 0.5
    %v366 = vtanh.pop %v357
    %v367 = vmul.f32 %v364, %v272
    %369 = vrot.lane.b32.xlu0 %v366, 64
    %v370 = vpop.permute.xlu0 %369
    %v372 = vmul.f32 %v364, %v370
    %374 = vrot.lane.b32.xlu0 %v372, 64
    %v375 = vpop.permute.xlu0 %374
    %v377 = vadd.f32 %v367, %v375
    %v378 = vtanh.pop %v377
    %380 = vrot.lane.b32.xlu0 %v378, 64
    %v381 = vpop.permute.xlu0 %380
    %v383 = vmul.f32 %v365, %v381
    %s384 = scalar_lea.vmem [#allocation4], 48
    %v385 = vld [vmem:[%s384] sm:$0xff]
    %v386 = vld [vmem:[%s384 + $0x8] sm:$0xff]
    %v388 = vsel %vm67, %v383, 0
    %390 = vmatprep.subr.mxu0 0.0
    %391 = vmatpush1.msra.mxu0 0.0
    %392 = vmatprep.subr.mxu0 0.0
    %393 = vmatpush1.msra.mxu0 0.0
    %394 = vmatprep.subr.mxu0 0.0
    %395 = vmatpush1.msra.mxu0 0.0
    %396 = vmatprep.subr.mxu0 0.0
    %397 = vmatpush1.msra.mxu0 0.0
    %398 = vmatprep.subr.mxu0 0.0
    %399 = vmatpush1.msra.mxu0 0.0
    %400 = vmatprep.subr.mxu0 0.0
    %401 = vmatpush1.msra.mxu0 0.0
    %402 = vmatprep.subr.mxu0 0.0
    %403 = vmatpush1.msra.mxu0 0.0
    %404 = vmatprep.subr.mxu0 0.0
    %405 = vmatpush1.msra.mxu0 0.0
    %406 = vmatprep.subr.mxu0 %v62
    %407 = vmatpush1.msra.mxu0 %v61
    %408 = vmatprep.subr.mxu0 %v60
    %409 = vmatpush1.msra.mxu0 %v59
    %410 = vmatprep.subr.mxu0 %v58
    %411 = vmatpush1.msra.mxu0 %v57
    %412 = vmatprep.subr.mxu0 %v56
    %413 = vmatpush1.msra.mxu0 %v55
    %414 = vmatprep.subr.mxu0 %v54
    %415 = vmatpush1.msra.mxu0 %v53
    %416 = vmatprep.subr.mxu0 %v52
    %417 = vmatpush1.msra.mxu0 %v51
    %418 = vmatprep.subr.mxu0 %v50
    %419 = vmatpush1.msra.mxu0 %v49
    %420 = vmatprep.subr.mxu0 %v48
    %421 = vmatpush1.msra.mxu0 %v47
    %422 = vmatprep.subr.mxu0 0.0
    %423 = vmatpush2.msra.mxu0 0.0
    %424 = vmatprep.subr.mxu0 0.0
    %425 = vmatpush2.msra.mxu0 0.0
    %426 = vmatprep.subr.mxu0 0.0
    %427 = vmatpush2.msra.mxu0 0.0
    %428 = vmatprep.subr.mxu0 0.0
    %429 = vmatpush2.msra.mxu0 0.0
    %430 = vmatprep.subr.mxu0 0.0
    %431 = vmatpush2.msra.mxu0 0.0
    %432 = vmatprep.subr.mxu0 0.0
    %433 = vmatpush2.msra.mxu0 0.0
    %434 = vmatprep.subr.mxu0 0.0
    %435 = vmatpush2.msra.mxu0 0.0
    %436 = vmatprep.subr.mxu0 0.0
    %437 = vmatpush2.msra.mxu0 0.0
    %438 = vmatprep.subr.mxu0 0.0
    %439 = vmatpush2.msra.mxu0 0.0
    %440 = vmatprep.subr.mxu0 0.0
    %441 = vmatpush2.msra.mxu0 0.0
    %442 = vmatprep.subr.mxu0 0.0
    %443 = vmatpush2.msra.mxu0 0.0
    %444 = vmatprep.subr.mxu0 0.0
    %445 = vmatpush2.msra.mxu0 0.0
    %446 = vmatprep.subr.mxu0 0.0
    %447 = vmatpush2.msra.mxu0 0.0
    %448 = vmatprep.subr.mxu0 0.0
    %449 = vmatpush2.msra.mxu0 0.0
    %450 = vmatprep.subr.mxu0 0.0
    %451 = vmatpush2.msra.mxu0 0.0
    %452 = vmatprep.subr.mxu0 0.0
    %453 = vmatpush2.msra.mxu0 0.0
    %454 = vmatprep.mubr.f32.mxu0 0.0
    %455 = vmatmul.mubr.f32.gmra.mxu0 %v388
    %v456 = vpop.f32.mrf.mxu0
    %v457 = vadd.f32 0.0, %v456
    %v458 = vpop.f32.mrf.mxu0
    %v459 = vadd.f32 0.0, %v458
    %460 = vdwg.mxu0
    %v461 = vadd.f32 %v385, %v457
    %v462 = vadd.f32 %v386, %v459
    %v463 = vmul.f32 %v461, 0.5
    %v464 = vmul.f32 %v462, 0.5
    %v465 = vtanh.pop %v463
    %v466 = vtanh.pop %v464
    %v467 = vmul.f32 %v465, 0.5
    %v468 = vmul.f32 %v466, 0.5
    %v469 = vadd.f32 %v467, 0.5
    %v470 = vadd.f32 %v468, 0.5
    %v471 = vtanh.pop %v462
    %v472 = vmul.f32 %v469, %v377
    %474 = vrot.lane.b32.xlu0 %v471, 64
    %v475 = vpop.permute.xlu0 %474
    %v477 = vmul.f32 %v469, %v475
    %479 = vrot.lane.b32.xlu0 %v477, 64
    %v480 = vpop.permute.xlu0 %479
    %v482 = vadd.f32 %v472, %v480
    %v483 = vtanh.pop %v482
    %485 = vrot.lane.b32.xlu0 %v483, 64
    %v486 = vpop.permute.xlu0 %485
    %v488 = vmul.f32 %v470, %v486
    %s489 = scalar_lea.vmem [#allocation4], 64
    %v490 = vld [vmem:[%s489] sm:$0xff]
    %v491 = vld [vmem:[%s489 + $0x8] sm:$0xff]
    %v493 = vsel %vm67, %v488, 0
    %495 = vmatprep.subr.mxu0 0.0
    %496 = vmatpush1.msra.mxu0 0.0
    %497 = vmatprep.subr.mxu0 0.0
    %498 = vmatpush1.msra.mxu0 0.0
    %499 = vmatprep.subr.mxu0 0.0
    %500 = vmatpush1.msra.mxu0 0.0
    %501 = vmatprep.subr.mxu0 0.0
    %502 = vmatpush1.msra.mxu0 0.0
    %503 = vmatprep.subr.mxu0 0.0
    %504 = vmatpush1.msra.mxu0 0.0
    %505 = vmatprep.subr.mxu0 0.0
    %506 = vmatpush1.msra.mxu0 0.0
    %507 = vmatprep.subr.mxu0 0.0
    %508 = vmatpush1.msra.mxu0 0.0
    %509 = vmatprep.subr.mxu0 0.0
    %510 = vmatpush1.msra.mxu0 0.0
    %511 = vmatprep.subr.mxu0 %v62
    %512 = vmatpush1.msra.mxu0 %v61
    %513 = vmatprep.subr.mxu0 %v60
    %514 = vmatpush1.msra.mxu0 %v59
    %515 = vmatprep.subr.mxu0 %v58
    %516 = vmatpush1.msra.mxu0 %v57
    %517 = vmatprep.subr.mxu0 %v56
    %518 = vmatpush1.msra.mxu0 %v55
    %519 = vmatprep.subr.mxu0 %v54
    %520 = vmatpush1.msra.mxu0 %v53
    %521 = vmatprep.subr.mxu0 %v52
    %522 = vmatpush1.msra.mxu0 %v51
    %523 = vmatprep.subr.mxu0 %v50
    %524 = vmatpush1.msra.mxu0 %v49
    %525 = vmatprep.subr.mxu0 %v48
    %526 = vmatpush1.msra.mxu0 %v47
    %527 = vmatprep.subr.mxu0 0.0
    %528 = vmatpush2.msra.mxu0 0.0
    %529 = vmatprep.subr.mxu0 0.0
    %530 = vmatpush2.msra.mxu0 0.0
    %531 = vmatprep.subr.mxu0 0.0
    %532 = vmatpush2.msra.mxu0 0.0
    %533 = vmatprep.subr.mxu0 0.0
    %534 = vmatpush2.msra.mxu0 0.0
    %535 = vmatprep.subr.mxu0 0.0
    %536 = vmatpush2.msra.mxu0 0.0
    %537 = vmatprep.subr.mxu0 0.0
    %538 = vmatpush2.msra.mxu0 0.0
    %539 = vmatprep.subr.mxu0 0.0
    %540 = vmatpush2.msra.mxu0 0.0
    %541 = vmatprep.subr.mxu0 0.0
    %542 = vmatpush2.msra.mxu0 0.0
    %543 = vmatprep.subr.mxu0 0.0
    %544 = vmatpush2.msra.mxu0 0.0
    %545 = vmatprep.subr.mxu0 0.0
    %546 = vmatpush2.msra.mxu0 0.0
    %547 = vmatprep.subr.mxu0 0.0
    %548 = vmatpush2.msra.mxu0 0.0
    %549 = vmatprep.subr.mxu0 0.0
    %550 = vmatpush2.msra.mxu0 0.0
    %551 = vmatprep.subr.mxu0 0.0
    %552 = vmatpush2.msra.mxu0 0.0
    %553 = vmatprep.subr.mxu0 0.0
    %554 = vmatpush2.msra.mxu0 0.0
    %555 = vmatprep.subr.mxu0 0.0
    %556 = vmatpush2.msra.mxu0 0.0
    %557 = vmatprep.subr.mxu0 0.0
    %558 = vmatpush2.msra.mxu0 0.0
    %559 = vmatprep.mubr.f32.mxu0 0.0
    %560 = vmatmul.mubr.f32.gmra.mxu0 %v493
    %v561 = vpop.f32.mrf.mxu0
    %v562 = vadd.f32 0.0, %v561
    %v563 = vpop.f32.mrf.mxu0
    %v564 = vadd.f32 0.0, %v563
    %565 = vdwg.mxu0
    %v566 = vadd.f32 %v490, %v562
    %v567 = vadd.f32 %v491, %v564
    %v568 = vmul.f32 %v566, 0.5
    %v569 = vmul.f32 %v567, 0.5
    %v570 = vtanh.pop %v568
    %v571 = vtanh.pop %v569
    %v572 = vmul.f32 %v570, 0.5
    %v573 = vmul.f32 %v571, 0.5
    %v574 = vadd.f32 %v572, 0.5
    %v575 = vadd.f32 %v573, 0.5
    %v576 = vtanh.pop %v567
    %v577 = vmul.f32 %v574, %v482
    %579 = vrot.lane.b32.xlu0 %v576, 64
    %v580 = vpop.permute.xlu0 %579
    %v582 = vmul.f32 %v574, %v580
    %584 = vrot.lane.b32.xlu0 %v582, 64
    %v585 = vpop.permute.xlu0 %584
    %v587 = vadd.f32 %v577, %v585
    %v588 = vtanh.pop %v587
    %590 = vrot.lane.b32.xlu0 %v588, 64
    %v591 = vpop.permute.xlu0 %590
    %v593 = vmul.f32 %v575, %v591
    %s594 = scalar_lea.vmem [#allocation4], 80
    %v595 = vld [vmem:[%s594] sm:$0xff]
    %v596 = vld [vmem:[%s594 + $0x8] sm:$0xff]
    %v598 = vsel %vm67, %v593, 0
    %600 = vmatprep.subr.mxu0 0.0
    %601 = vmatpush1.msra.mxu0 0.0
    %602 = vmatprep.subr.mxu0 0.0
    %603 = vmatpush1.msra.mxu0 0.0
    %604 = vmatprep.subr.mxu0 0.0
    %605 = vmatpush1.msra.mxu0 0.0
    %606 = vmatprep.subr.mxu0 0.0
    %607 = vmatpush1.msra.mxu0 0.0
    %608 = vmatprep.subr.mxu0 0.0
    %609 = vmatpush1.msra.mxu0 0.0
    %610 = vmatprep.subr.mxu0 0.0
    %611 = vmatpush1.msra.mxu0 0.0
    %612 = vmatprep.subr.mxu0 0.0
    %613 = vmatpush1.msra.mxu0 0.0
    %614 = vmatprep.subr.mxu0 0.0
    %615 = vmatpush1.msra.mxu0 0.0
    %616 = vmatprep.subr.mxu0 %v62
    %617 = vmatpush1.msra.mxu0 %v61
    %618 = vmatprep.subr.mxu0 %v60
    %619 = vmatpush1.msra.mxu0 %v59
    %620 = vmatprep.subr.mxu0 %v58
    %621 = vmatpush1.msra.mxu0 %v57
    %622 = vmatprep.subr.mxu0 %v56
    %623 = vmatpush1.msra.mxu0 %v55
    %624 = vmatprep.subr.mxu0 %v54
    %625 = vmatpush1.msra.mxu0 %v53
    %626 = vmatprep.subr.mxu0 %v52
    %627 = vmatpush1.msra.mxu0 %v51
    %628 = vmatprep.subr.mxu0 %v50
    %629 = vmatpush1.msra.mxu0 %v49
    %630 = vmatprep.subr.mxu0 %v48
    %631 = vmatpush1.msra.mxu0 %v47
    %632 = vmatprep.subr.mxu0 0.0
    %633 = vmatpush2.msra.mxu0 0.0
    %634 = vmatprep.subr.mxu0 0.0
    %635 = vmatpush2.msra.mxu0 0.0
    %636 = vmatprep.subr.mxu0 0.0
    %637 = vmatpush2.msra.mxu0 0.0
    %638 = vmatprep.subr.mxu0 0.0
    %639 = vmatpush2.msra.mxu0 0.0
    %640 = vmatprep.subr.mxu0 0.0
    %641 = vmatpush2.msra.mxu0 0.0
    %642 = vmatprep.subr.mxu0 0.0
    %643 = vmatpush2.msra.mxu0 0.0
    %644 = vmatprep.subr.mxu0 0.0
    %645 = vmatpush2.msra.mxu0 0.0
    %646 = vmatprep.subr.mxu0 0.0
    %647 = vmatpush2.msra.mxu0 0.0
    %648 = vmatprep.subr.mxu0 0.0
    %649 = vmatpush2.msra.mxu0 0.0
    %650 = vmatprep.subr.mxu0 0.0
    %651 = vmatpush2.msra.mxu0 0.0
    %652 = vmatprep.subr.mxu0 0.0
    %653 = vmatpush2.msra.mxu0 0.0
    %654 = vmatprep.subr.mxu0 0.0
    %655 = vmatpush2.msra.mxu0 0.0
    %656 = vmatprep.subr.mxu0 0.0
    %657 = vmatpush2.msra.mxu0 0.0
    %658 = vmatprep.subr.mxu0 0.0
    %659 = vmatpush2.msra.mxu0 0.0
    %660 = vmatprep.subr.mxu0 0.0
    %661 = vmatpush2.msra.mxu0 0.0
    %662 = vmatprep.subr.mxu0 0.0
    %663 = vmatpush2.msra.mxu0 0.0
    %664 = vmatprep.mubr.f32.mxu0 0.0
    %665 = vmatmul.mubr.f32.gmra.mxu0 %v598
    %v666 = vpop.f32.mrf.mxu0
    %v667 = vadd.f32 0.0, %v666
    %v668 = vpop.f32.mrf.mxu0
    %v669 = vadd.f32 0.0, %v668
    %670 = vdwg.mxu0
    %v671 = vadd.f32 %v595, %v667
    %v672 = vadd.f32 %v596, %v669
    %v673 = vmul.f32 %v671, 0.5
    %v674 = vmul.f32 %v672, 0.5
    %v675 = vtanh.pop %v673
    %v676 = vtanh.pop %v674
    %v677 = vmul.f32 %v675, 0.5
    %v678 = vmul.f32 %v676, 0.5
    %v679 = vadd.f32 %v677, 0.5
    %v680 = vadd.f32 %v678, 0.5
    %v681 = vtanh.pop %v672
    %v682 = vmul.f32 %v679, %v587
    %684 = vrot.lane.b32.xlu0 %v681, 64
    %v685 = vpop.permute.xlu0 %684
    %v687 = vmul.f32 %v679, %v685
    %689 = vrot.lane.b32.xlu0 %v687, 64
    %v690 = vpop.permute.xlu0 %689
    %v692 = vadd.f32 %v682, %v690
    %v693 = vtanh.pop %v692
    %695 = vrot.lane.b32.xlu0 %v693, 64
    %v696 = vpop.permute.xlu0 %695
    %v698 = vmul.f32 %v680, %v696
    %s699 = scalar_lea.vmem [#allocation4], 96
    %v700 = vld [vmem:[%s699] sm:$0xff]
    %v701 = vld [vmem:[%s699 + $0x8] sm:$0xff]
    %v703 = vsel %vm67, %v698, 0
    %705 = vmatprep.subr.mxu0 0.0
    %706 = vmatpush1.msra.mxu0 0.0
    %707 = vmatprep.subr.mxu0 0.0
    %708 = vmatpush1.msra.mxu0 0.0
    %709 = vmatprep.subr.mxu0 0.0
    %710 = vmatpush1.msra.mxu0 0.0
    %711 = vmatprep.subr.mxu0 0.0
    %712 = vmatpush1.msra.mxu0 0.0
    %713 = vmatprep.subr.mxu0 0.0
    %714 = vmatpush1.msra.mxu0 0.0
    %715 = vmatprep.subr.mxu0 0.0
    %716 = vmatpush1.msra.mxu0 0.0
    %717 = vmatprep.subr.mxu0 0.0
    %718 = vmatpush1.msra.mxu0 0.0
    %719 = vmatprep.subr.mxu0 0.0
    %720 = vmatpush1.msra.mxu0 0.0
    %721 = vmatprep.subr.mxu0 %v62
    %722 = vmatpush1.msra.mxu0 %v61
    %723 = vmatprep.subr.mxu0 %v60
    %724 = vmatpush1.msra.mxu0 %v59
    %725 = vmatprep.subr.mxu0 %v58
    %726 = vmatpush1.msra.mxu0 %v57
    %727 = vmatprep.subr.mxu0 %v56
    %728 = vmatpush1.msra.mxu0 %v55
    %729 = vmatprep.subr.mxu0 %v54
    %730 = vmatpush1.msra.mxu0 %v53
    %731 = vmatprep.subr.mxu0 %v52
    %732 = vmatpush1.msra.mxu0 %v51
    %733 = vmatprep.subr.mxu0 %v50
    %734 = vmatpush1.msra.mxu0 %v49
    %735 = vmatprep.subr.mxu0 %v48
    %736 = vmatpush1.msra.mxu0 %v47
    %737 = vmatprep.subr.mxu0 0.0
    %738 = vmatpush2.msra.mxu0 0.0
    %739 = vmatprep.subr.mxu0 0.0
    %740 = vmatpush2.msra.mxu0 0.0
    %741 = vmatprep.subr.mxu0 0.0
    %742 = vmatpush2.msra.mxu0 0.0
    %743 = vmatprep.subr.mxu0 0.0
    %744 = vmatpush2.msra.mxu0 0.0
    %745 = vmatprep.subr.mxu0 0.0
    %746 = vmatpush2.msra.mxu0 0.0
    %747 = vmatprep.subr.mxu0 0.0
    %748 = vmatpush2.msra.mxu0 0.0
    %749 = vmatprep.subr.mxu0 0.0
    %750 = vmatpush2.msra.mxu0 0.0
    %751 = vmatprep.subr.mxu0 0.0
    %752 = vmatpush2.msra.mxu0 0.0
    %753 = vmatprep.subr.mxu0 0.0
    %754 = vmatpush2.msra.mxu0 0.0
    %755 = vmatprep.subr.mxu0 0.0
    %756 = vmatpush2.msra.mxu0 0.0
    %757 = vmatprep.subr.mxu0 0.0
    %758 = vmatpush2.msra.mxu0 0.0
    %759 = vmatprep.subr.mxu0 0.0
    %760 = vmatpush2.msra.mxu0 0.0
    %761 = vmatprep.subr.mxu0 0.0
    %762 = vmatpush2.msra.mxu0 0.0
    %763 = vmatprep.subr.mxu0 0.0
    %764 = vmatpush2.msra.mxu0 0.0
    %765 = vmatprep.subr.mxu0 0.0
    %766 = vmatpush2.msra.mxu0 0.0
    %767 = vmatprep.subr.mxu0 0.0
    %768 = vmatpush2.msra.mxu0 0.0
    %769 = vmatprep.mubr.f32.mxu0 0.0
    %770 = vmatmul.mubr.f32.gmra.mxu0 %v703
    %v771 = vpop.f32.mrf.mxu0
    %v772 = vadd.f32 0.0, %v771
    %v773 = vpop.f32.mrf.mxu0
    %v774 = vadd.f32 0.0, %v773
    %775 = vdwg.mxu0
    %v776 = vadd.f32 %v700, %v772
    %v777 = vadd.f32 %v701, %v774
    %v778 = vmul.f32 %v776, 0.5
    %v779 = vmul.f32 %v777, 0.5
    %v780 = vtanh.pop %v778
    %v781 = vtanh.pop %v779
    %v782 = vmul.f32 %v780, 0.5
    %v783 = vmul.f32 %v781, 0.5
    %v784 = vadd.f32 %v782, 0.5
    %v785 = vadd.f32 %v783, 0.5
    %v786 = vtanh.pop %v777
    %v787 = vmul.f32 %v784, %v692
    %789 = vrot.lane.b32.xlu0 %v786, 64
    %v790 = vpop.permute.xlu0 %789
    %v792 = vmul.f32 %v784, %v790
    %794 = vrot.lane.b32.xlu0 %v792, 64
    %v795 = vpop.permute.xlu0 %794
    %v797 = vadd.f32 %v787, %v795
    %v798 = vtanh.pop %v797
    %800 = vrot.lane.b32.xlu0 %v798, 64
    %v801 = vpop.permute.xlu0 %800
    %v803 = vmul.f32 %v785, %v801
    %s804 = scalar_lea.vmem [#allocation4], 112
    %v805 = vld [vmem:[%s804] sm:$0xff]
    %v806 = vld [vmem:[%s804 + $0x8] sm:$0xff]
    %v808 = vsel %vm67, %v803, 0
    %810 = vmatprep.subr.mxu0 0.0
    %811 = vmatpush1.msra.mxu0 0.0
    %812 = vmatprep.subr.mxu0 0.0
    %813 = vmatpush1.msra.mxu0 0.0
    %814 = vmatprep.subr.mxu0 0.0
    %815 = vmatpush1.msra.mxu0 0.0
    %816 = vmatprep.subr.mxu0 0.0
    %817 = vmatpush1.msra.mxu0 0.0
    %818 = vmatprep.subr.mxu0 0.0
    %819 = vmatpush1.msra.mxu0 0.0
    %820 = vmatprep.subr.mxu0 0.0
    %821 = vmatpush1.msra.mxu0 0.0
    %822 = vmatprep.subr.mxu0 0.0
    %823 = vmatpush1.msra.mxu0 0.0
    %824 = vmatprep.subr.mxu0 0.0
    %825 = vmatpush1.msra.mxu0 0.0
    %826 = vmatprep.subr.mxu0 %v62
    %827 = vmatpush1.msra.mxu0 %v61
    %828 = vmatprep.subr.mxu0 %v60
    %829 = vmatpush1.msra.mxu0 %v59
    %830 = vmatprep.subr.mxu0 %v58
    %831 = vmatpush1.msra.mxu0 %v57
    %832 = vmatprep.subr.mxu0 %v56
    %833 = vmatpush1.msra.mxu0 %v55
    %834 = vmatprep.subr.mxu0 %v54
    %835 = vmatpush1.msra.mxu0 %v53
    %836 = vmatprep.subr.mxu0 %v52
    %837 = vmatpush1.msra.mxu0 %v51
    %838 = vmatprep.subr.mxu0 %v50
    %839 = vmatpush1.msra.mxu0 %v49
    %840 = vmatprep.subr.mxu0 %v48
    %841 = vmatpush1.msra.mxu0 %v47
    %842 = vmatprep.subr.mxu0 0.0
    %843 = vmatpush2.msra.mxu0 0.0
    %844 = vmatprep.subr.mxu0 0.0
    %845 = vmatpush2.msra.mxu0 0.0
    %846 = vmatprep.subr.mxu0 0.0
    %847 = vmatpush2.msra.mxu0 0.0
    %848 = vmatprep.subr.mxu0 0.0
    %849 = vmatpush2.msra.mxu0 0.0
    %850 = vmatprep.subr.mxu0 0.0
    %851 = vmatpush2.msra.mxu0 0.0
    %852 = vmatprep.subr.mxu0 0.0
    %853 = vmatpush2.msra.mxu0 0.0
    %854 = vmatprep.subr.mxu0 0.0
    %855 = vmatpush2.msra.mxu0 0.0
    %856 = vmatprep.subr.mxu0 0.0
    %857 = vmatpush2.msra.mxu0 0.0
    %858 = vmatprep.subr.mxu0 0.0
    %859 = vmatpush2.msra.mxu0 0.0
    %860 = vmatprep.subr.mxu0 0.0
    %861 = vmatpush2.msra.mxu0 0.0
    %862 = vmatprep.subr.mxu0 0.0
    %863 = vmatpush2.msra.mxu0 0.0
    %864 = vmatprep.subr.mxu0 0.0
    %865 = vmatpush2.msra.mxu0 0.0
    %866 = vmatprep.subr.mxu0 0.0
    %867 = vmatpush2.msra.mxu0 0.0
    %868 = vmatprep.subr.mxu0 0.0
    %869 = vmatpush2.msra.mxu0 0.0
    %870 = vmatprep.subr.mxu0 0.0
    %871 = vmatpush2.msra.mxu0 0.0
    %872 = vmatprep.subr.mxu0 0.0
    %873 = vmatpush2.msra.mxu0 0.0
    %874 = vmatprep.mubr.f32.mxu0 0.0
    %875 = vmatmul.mubr.f32.gmra.mxu0 %v808
    %v876 = vpop.f32.mrf.mxu0
    %v877 = vadd.f32 0.0, %v876
    %v878 = vpop.f32.mrf.mxu0
    %v879 = vadd.f32 0.0, %v878
    %880 = vdwg.mxu0
    %v881 = vadd.f32 %v805, %v877
    %v882 = vadd.f32 %v806, %v879
    %v883 = vmul.f32 %v881, 0.5
    %v884 = vmul.f32 %v882, 0.5
    %v885 = vtanh.pop %v883
    %v886 = vtanh.pop %v884
    %v887 = vmul.f32 %v885, 0.5
    %v888 = vmul.f32 %v886, 0.5
    %v889 = vadd.f32 %v887, 0.5
    %v890 = vadd.f32 %v888, 0.5
    %v891 = vtanh.pop %v882
    %v892 = vmul.f32 %v889, %v797
    %894 = vrot.lane.b32.xlu0 %v891, 64
    %v895 = vpop.permute.xlu0 %894
    %v897 = vmul.f32 %v889, %v895
    %899 = vrot.lane.b32.xlu0 %v897, 64
    %v900 = vpop.permute.xlu0 %899
    %v902 = vadd.f32 %v892, %v900
    %v903 = vtanh.pop %v902
    %905 = vrot.lane.b32.xlu0 %v903, 64
    %v906 = vpop.permute.xlu0 %905
    %v908 = vmul.f32 %v890, %v906
    %909 = vst.msk [vmem:[#allocation2] sm:$0xff] %vm67, %v908
    %911 = vrot.lane.b32.xlu0 %v902, 64
    %v912 = vpop.permute.xlu0 %911
    %914 = vst.msk [vmem:[#allocation3] sm:$0xff] %vm67, %v912
    // Predicated region
    $region22: #{tpu_custom_call.1} parent=1 // pred_check
      %p915 = pneg %p40
    $region23: #{tpu_custom_call.1} parent=1 // pred_check_branch
      %917 = sbr.rel (%p915) target = $region25
    $region24: #{tpu_custom_call.1} parent=1 // pred_region
      %918 = vst.msk [vmem:[#allocation9] sm:$0xff] %vm67, %v908
    $region25: #{tpu_custom_call.1} parent=1 // pred_fallthru
      _
    // Predicated region
    $region26: #{tpu_custom_call.1} parent=1 // pred_check
      _
    $region27: #{tpu_custom_call.1} parent=1 // pred_check_branch
      %920 = sbr.rel (0) target = $region29
    $region28: #{tpu_custom_call.1} parent=1 // pred_region
      %s922 = ssub.s32 128, 128
      %923 = vsyncadd [#allocation6], %s922
      %s925 = sshll.u32 [#allocation9], 4
      %s926 = int_to_ptr.vmem [resolvable:$true] %s925
      %928 = dma.vmem_to_hbm [thread:$0]  %s926, 128, %s2, [#allocation6]
    $region29: #{tpu_custom_call.1} parent=1 // pred_fallthru
      _
    // Predicated region
    $region30: #{tpu_custom_call.1} parent=1 // pred_check
      _
    $region31: #{tpu_custom_call.1} parent=1 // pred_check_branch
      %930 = sbr.rel (0) target = $region33
    $region32: #{tpu_custom_call.1} parent=1 // pred_region
      %931 = dma.done [#allocation6], 128
    $region33: #{tpu_custom_call.1} parent=1 // pred_fallthru
      _
    %932 = vsyncpa [#allocation5], 1
    %933 = vsyncpa [#allocation8], 1
    %934 = vsyncpa [#allocation6], 1

// kernel: tpu_custom_call.1
$region0: #{tpu_custom_call.1}
  #allocation0 [shape = 'u32[]', space=smem, size = 0x4, offset = 0x4, fixed_abs, tag = 'smem constant byte address 0x4 - core index']
  #allocation1 [shape = 'u32[144,128]{1,0:T(1,128)}', space=vmem, size = 0x12000, scoped, tag = 'internal scratch']
  #allocation2 [shape = 'f32[8,64]{1,0:T(8,128)}', space=vmem, size = 0x1000, scoped, tag = 'scratch operand']
  #allocation3 [shape = 'f32[8,64]{1,0:T(8,128)}', space=vmem, size = 0x1000, scoped, tag = 'scratch operand']
  %s0 = inlined_call_operand.hbm [shape: f32[8,8,256], index: 0, kind: input, shape index: {}]
  %s1 = inlined_call_operand.hbm [shape: f32[64,256], index: 1, kind: input, shape index: {}]
  %s2 = inlined_call_operand.hbm [shape: f32[8,64], index: 2, kind: output, shape index: {}]
  %s3 = sld [smem:[#allocation0]]
  $region34: #{tpu_custom_call.1} parent=0
    _
  %s5 = ssub.s32 1, %s3
  %s6 = scalar_select 0, %s5, %s3
  $region1: #{tpu_custom_call.1} parent=0
    #allocation4 [shape = 'u8[65536]{0}', space=vmem, size = 0x10000, scoped, tag = 'input window, operand 0, single buffered']
    #allocation5 [shape = 's32[1]{0}', space=sflag, size = 0x4, scoped, tag = 'scoped memory for tpu_custom_call.1']
    #allocation6 [shape = 's32[1]{0}', space=sflag, size = 0x4, scoped, tag = 'scoped memory for tpu_custom_call.1']
    #allocation7 [shape = 'u8[65536]{0}', space=vmem, size = 0x10000, scoped, tag = 'input window, operand 1, single buffered']
    #allocation8 [shape = 's32[1]{0}', space=sflag, size = 0x4, scoped, tag = 'scoped memory for tpu_custom_call.1']
    #allocation9 [shape = 'u8[4096]{0}', space=vmem, size = 0x1000, scoped, tag = 'output window, operand 0, single buffered']
    %7 = vsyncpa [#allocation5], 0
    %8 = vsyncpa [#allocation8], 0
    %9 = vsyncpa [#allocation6], 0
    // Predicated region
    $region2: #{tpu_custom_call.1} parent=1 // pred_check
      _
    $region3: #{tpu_custom_call.1} parent=1 // pred_check_branch
      %11 = sbr.rel (0) target = $region5
    $region4: #{tpu_custom_call.1} parent=1 // pred_region
      %s13 = ssub.s32 2048, 2048
      %14 = vsyncadd [#allocation5], %s13
      %s15 = sshll.u32 [#allocation4], 4
      %s16 = int_to_ptr.vmem [resolvable:$true] %s15
      %21 = dma.hbm_to_vmem [thread:$0]  %s0, 2048, %s16, [#allocation5], 256, 256, 16
    $region5: #{tpu_custom_call.1} parent=1 // pred_fallthru
      _
    // Predicated region
    $region6: #{tpu_custom_call.1} parent=1 // pred_check
      _
    $region7: #{tpu_custom_call.1} parent=1 // pred_check_branch
      %23 = sbr.rel (0) target = $region9
    $region8: #{tpu_custom_call.1} parent=1 // pred_region
      %s25 = ssub.s32 2048, 2048
      %26 = vsyncadd [#allocation8], %s25
      %s27 = sshll.u32 [#allocation7], 4
      %s28 = int_to_ptr.vmem [resolvable:$true] %s27
      %33 = dma.hbm_to_vmem [thread:$0]  %s1, 2048, %s28, [#allocation8], 256, 256, 16
    $region9: #{tpu_custom_call.1} parent=1 // pred_fallthru
      _
    // Predicated region
    $region10: #{tpu_custom_call.1} parent=1 // pred_check
      _
    $region11: #{tpu_custom_call.1} parent=1 // pred_check_branch
      %35 = sbr.rel (0) target = $region13
    $region12: #{tpu_custom_call.1} parent=1 // pred_region
      %36 = dma.done [#allocation5], 2048
    $region13: #{tpu_custom_call.1} parent=1 // pred_fallthru
      _
    // Predicated region
    $region14: #{tpu_custom_call.1} parent=1 // pred_check
      _
    $region15: #{tpu_custom_call.1} parent=1 // pred_check_branch
      %38 = sbr.rel (0) target = $region17
    $region16: #{tpu_custom_call.1} parent=1 // pred_region
      %39 = dma.done [#allocation8], 2048
    $region17: #{tpu_custom_call.1} parent=1 // pred_fallthru
      _
    %p40 = scmp.eq.s32.totalorder 0, 0
    // Predicated region
    $region18: #{tpu_custom_call.1} parent=1 // pred_check
      %p41 = pneg %p40
    $region19: #{tpu_custom_call.1} parent=1 // pred_check_branch
      %43 = sbr.rel (%p41) target = $region21
    $region20: #{tpu_custom_call.1} parent=1 // pred_region
      %vm44 = vcmask 523264
      %45 = vst.msk [vmem:[#allocation2] sm:$0xff] %vm44, 0.0
      %46 = vst.msk [vmem:[#allocation3] sm:$0xff] %vm44, 0.0
    $region21: #{tpu_custom_call.1} parent=1 // pred_fallthru
      _
    %v47 = vld [vmem:[#allocation7] sm:$0xff]
    %v48 = vld [vmem:[#allocation7 + $0x8] sm:$0xff]
    %v49 = vld [vmem:[#allocation7 + $0x10] sm:$0xff]
    %v50 = vld [vmem:[#allocation7 + $0x18] sm:$0xff]
    %v51 = vld [vmem:[#allocation7 + $0x20] sm:$0xff]
    %v52 = vld [vmem:[#allocation7 + $0x28] sm:$0xff]
    %v53 = vld [vmem:[#allocation7 + $0x30] sm:$0xff]
    %v54 = vld [vmem:[#allocation7 + $0x38] sm:$0xff]
    %v55 = vld [vmem:[#allocation7 + $0x40] sm:$0xff]
    %v56 = vld [vmem:[#allocation7 + $0x48] sm:$0xff]
    %v57 = vld [vmem:[#allocation7 + $0x50] sm:$0xff]
    %v58 = vld [vmem:[#allocation7 + $0x58] sm:$0xff]
    %v59 = vld [vmem:[#allocation7 + $0x60] sm:$0xff]
    %v60 = vld [vmem:[#allocation7 + $0x68] sm:$0xff]
    %v61 = vld [vmem:[#allocation7 + $0x70] sm:$0xff]
    %v62 = vld [vmem:[#allocation7 + $0x78] sm:$0xff]
    %v63 = vld [vmem:[#allocation2] sm:$0xff]
    %v64 = vld [vmem:[#allocation3] sm:$0xff]
    %v65 = vld [vmem:[#allocation4] sm:$0xff]
    %v66 = vld [vmem:[#allocation4 + $0x8] sm:$0xff]
    %vm67 = vcmask 523264
    %v69 = vsel %vm67, %v63, 0
    %71 = vmatprep.subr.mxu0 0.0
    %72 = vmatpush1.msra.mxu0 0.0
    %73 = vmatprep.subr.mxu0 0.0
    %74 = vmatpush1.msra.mxu0 0.0
    %75 = vmatprep.subr.mxu0 0.0
    %76 = vmatpush1.msra.mxu0 0.0
    %77 = vmatprep.subr.mxu0 0.0
    %78 = vmatpush1.msra.mxu0 0.0
    %79 = vmatprep.subr.mxu0 0.0
    %80 = vmatpush1.msra.mxu0 0.0
    %81 = vmatprep.subr.mxu0 0.0
    %82 = vmatpush1.msra.mxu0 0.0
    %83 = vmatprep.subr.mxu0 0.0
    %84 = vmatpush1.msra.mxu0 0.0
    %85 = vmatprep.subr.mxu0 0.0
    %86 = vmatpush1.msra.mxu0 0.0
    %87 = vmatprep.subr.mxu0 %v62
    %88 = vmatpush1.msra.mxu0 %v61
    %89 = vmatprep.subr.mxu0 %v60
    %90 = vmatpush1.msra.mxu0 %v59
    %91 = vmatprep.subr.mxu0 %v58
    %92 = vmatpush1.msra.mxu0 %v57
    %93 = vmatprep.subr.mxu0 %v56
    %94 = vmatpush1.msra.mxu0 %v55
    %95 = vmatprep.subr.mxu0 %v54
    %96 = vmatpush1.msra.mxu0 %v53
    %97 = vmatprep.subr.mxu0 %v52
    %98 = vmatpush1.msra.mxu0 %v51
    %99 = vmatprep.subr.mxu0 %v50
    %100 = vmatpush1.msra.mxu0 %v49
    %101 = vmatprep.subr.mxu0 %v48
    %102 = vmatpush1.msra.mxu0 %v47
    %103 = vmatprep.subr.mxu0 0.0
    %104 = vmatpush2.msra.mxu0 0.0
    %105 = vmatprep.subr.mxu0 0.0
    %106 = vmatpush2.msra.mxu0 0.0
    %107 = vmatprep.subr.mxu0 0.0
    %108 = vmatpush2.msra.mxu0 0.0
    %109 = vmatprep.subr.mxu0 0.0
    %110 = vmatpush2.msra.mxu0 0.0
    %111 = vmatprep.subr.mxu0 0.0
    %112 = vmatpush2.msra.mxu0 0.0
    %113 = vmatprep.subr.mxu0 0.0
    %114 = vmatpush2.msra.mxu0 0.0
    %115 = vmatprep.subr.mxu0 0.0
    %116 = vmatpush2.msra.mxu0 0.0
    %117 = vmatprep.subr.mxu0 0.0
    %118 = vmatpush2.msra.mxu0 0.0
    %119 = vmatprep.subr.mxu0 0.0
    %120 = vmatpush2.msra.mxu0 0.0
    %121 = vmatprep.subr.mxu0 0.0
    %122 = vmatpush2.msra.mxu0 0.0
    %123 = vmatprep.subr.mxu0 0.0
    %124 = vmatpush2.msra.mxu0 0.0
    %125 = vmatprep.subr.mxu0 0.0
    %126 = vmatpush2.msra.mxu0 0.0
    %127 = vmatprep.subr.mxu0 0.0
    %128 = vmatpush2.msra.mxu0 0.0
    %129 = vmatprep.subr.mxu0 0.0
    %130 = vmatpush2.msra.mxu0 0.0
    %131 = vmatprep.subr.mxu0 0.0
    %132 = vmatpush2.msra.mxu0 0.0
    %133 = vmatprep.subr.mxu0 0.0
    %134 = vmatpush2.msra.mxu0 0.0
    %135 = vmatprep.mubr.f32.mxu0 0.0
    %136 = vmatmul.mubr.f32.gmra.mxu0 %v69
    %v137 = vpop.f32.mrf.mxu0
    %v138 = vadd.f32 0.0, %v137
    %v139 = vpop.f32.mrf.mxu0
    %v140 = vadd.f32 0.0, %v139
    %141 = vdwg.mxu0
    %v142 = vadd.f32 %v65, %v138
    %v143 = vadd.f32 %v66, %v140
    %v144 = vmul.f32 %v142, 0.5
    %v145 = vmul.f32 %v143, 0.5
    %v146 = vtanh.pop %v144
    %v147 = vtanh.pop %v145
    %v148 = vmul.f32 %v146, 0.5
    %v149 = vmul.f32 %v147, 0.5
    %v150 = vadd.f32 %v148, 0.5
    %v151 = vadd.f32 %v149, 0.5
    %v152 = vtanh.pop %v143
    %154 = vrot.lane.b32.xlu0 %v64, 64
    %v155 = vpop.permute.xlu0 %154
    %v157 = vmul.f32 %v150, %v155
    %159 = vrot.lane.b32.xlu0 %v152, 64
    %v160 = vpop.permute.xlu0 %159
    %v162 = vmul.f32 %v150, %v160
    %164 = vrot.lane.b32.xlu0 %v162, 64
    %v165 = vpop.permute.xlu0 %164
    %v167 = vadd.f32 %v157, %v165
    %v168 = vtanh.pop %v167
    %170 = vrot.lane.b32.xlu0 %v168, 64
    %v171 = vpop.permute.xlu0 %170
    %v173 = vmul.f32 %v151, %v171
    %s174 = scalar_lea.vmem [#allocation4], 16
    %v175 = vld [vmem:[%s174] sm:$0xff]
    %v176 = vld [vmem:[%s174 + $0x8] sm:$0xff]
    %v178 = vsel %vm67, %v173, 0
    %180 = vmatprep.subr.mxu0 0.0
    %181 = vmatpush1.msra.mxu0 0.0
    %182 = vmatprep.subr.mxu0 0.0
    %183 = vmatpush1.msra.mxu0 0.0
    %184 = vmatprep.subr.mxu0 0.0
    %185 = vmatpush1.msra.mxu0 0.0
    %186 = vmatprep.subr.mxu0 0.0
    %187 = vmatpush1.msra.mxu0 0.0
    %188 = vmatprep.subr.mxu0 0.0
    %189 = vmatpush1.msra.mxu0 0.0
    %190 = vmatprep.subr.mxu0 0.0
    %191 = vmatpush1.msra.mxu0 0.0
    %192 = vmatprep.subr.mxu0 0.0
    %193 = vmatpush1.msra.mxu0 0.0
    %194 = vmatprep.subr.mxu0 0.0
    %195 = vmatpush1.msra.mxu0 0.0
    %196 = vmatprep.subr.mxu0 %v62
    %197 = vmatpush1.msra.mxu0 %v61
    %198 = vmatprep.subr.mxu0 %v60
    %199 = vmatpush1.msra.mxu0 %v59
    %200 = vmatprep.subr.mxu0 %v58
    %201 = vmatpush1.msra.mxu0 %v57
    %202 = vmatprep.subr.mxu0 %v56
    %203 = vmatpush1.msra.mxu0 %v55
    %204 = vmatprep.subr.mxu0 %v54
    %205 = vmatpush1.msra.mxu0 %v53
    %206 = vmatprep.subr.mxu0 %v52
    %207 = vmatpush1.msra.mxu0 %v51
    %208 = vmatprep.subr.mxu0 %v50
    %209 = vmatpush1.msra.mxu0 %v49
    %210 = vmatprep.subr.mxu0 %v48
    %211 = vmatpush1.msra.mxu0 %v47
    %212 = vmatprep.subr.mxu0 0.0
    %213 = vmatpush2.msra.mxu0 0.0
    %214 = vmatprep.subr.mxu0 0.0
    %215 = vmatpush2.msra.mxu0 0.0
    %216 = vmatprep.subr.mxu0 0.0
    %217 = vmatpush2.msra.mxu0 0.0
    %218 = vmatprep.subr.mxu0 0.0
    %219 = vmatpush2.msra.mxu0 0.0
    %220 = vmatprep.subr.mxu0 0.0
    %221 = vmatpush2.msra.mxu0 0.0
    %222 = vmatprep.subr.mxu0 0.0
    %223 = vmatpush2.msra.mxu0 0.0
    %224 = vmatprep.subr.mxu0 0.0
    %225 = vmatpush2.msra.mxu0 0.0
    %226 = vmatprep.subr.mxu0 0.0
    %227 = vmatpush2.msra.mxu0 0.0
    %228 = vmatprep.subr.mxu0 0.0
    %229 = vmatpush2.msra.mxu0 0.0
    %230 = vmatprep.subr.mxu0 0.0
    %231 = vmatpush2.msra.mxu0 0.0
    %232 = vmatprep.subr.mxu0 0.0
    %233 = vmatpush2.msra.mxu0 0.0
    %234 = vmatprep.subr.mxu0 0.0
    %235 = vmatpush2.msra.mxu0 0.0
    %236 = vmatprep.subr.mxu0 0.0
    %237 = vmatpush2.msra.mxu0 0.0
    %238 = vmatprep.subr.mxu0 0.0
    %239 = vmatpush2.msra.mxu0 0.0
    %240 = vmatprep.subr.mxu0 0.0
    %241 = vmatpush2.msra.mxu0 0.0
    %242 = vmatprep.subr.mxu0 0.0
    %243 = vmatpush2.msra.mxu0 0.0
    %244 = vmatprep.mubr.f32.mxu0 0.0
    %245 = vmatmul.mubr.f32.gmra.mxu0 %v178
    %v246 = vpop.f32.mrf.mxu0
    %v247 = vadd.f32 0.0, %v246
    %v248 = vpop.f32.mrf.mxu0
    %v249 = vadd.f32 0.0, %v248
    %250 = vdwg.mxu0
    %v251 = vadd.f32 %v175, %v247
    %v252 = vadd.f32 %v176, %v249
    %v253 = vmul.f32 %v251, 0.5
    %v254 = vmul.f32 %v252, 0.5
    %v255 = vtanh.pop %v253
    %v256 = vtanh.pop %v254
    %v257 = vmul.f32 %v255, 0.5
    %v258 = vmul.f32 %v256, 0.5
    %v259 = vadd.f32 %v257, 0.5
    %v260 = vadd.f32 %v258, 0.5
    %v261 = vtanh.pop %v252
    %v262 = vmul.f32 %v259, %v167
    %264 = vrot.lane.b32.xlu0 %v261, 64
    %v265 = vpop.permute.xlu0 %264
    %v267 = vmul.f32 %v259, %v265
    %269 = vrot.lane.b32.xlu0 %v267, 64
    %v270 = vpop.permute.xlu0 %269
    %v272 = vadd.f32 %v262, %v270
    %v273 = vtanh.pop %v272
    %275 = vrot.lane.b32.xlu0 %v273, 64
    %v276 = vpop.permute.xlu0 %275
    %v278 = vmul.f32 %v260, %v276
    %s279 = scalar_lea.vmem [#allocation4], 32
    %v280 = vld [vmem:[%s279] sm:$0xff]
    %v281 = vld [vmem:[%s279 + $0x8] sm:$0xff]
    %v283 = vsel %vm67, %v278, 0
    %285 = vmatprep.subr.mxu0 0.0
    %286 = vmatpush1.msra.mxu0 0.0
    %287 = vmatprep.subr.mxu0 0.0
    %288 = vmatpush1.msra.mxu0 0.0
    %289 = vmatprep.subr.mxu0 0.0
    %290 = vmatpush1.msra.mxu0 0.0
    %291 = vmatprep.subr.mxu0 0.0
    %292 = vmatpush1.msra.mxu0 0.0
    %293 = vmatprep.subr.mxu0 0.0
    %294 = vmatpush1.msra.mxu0 0.0
    %295 = vmatprep.subr.mxu0 0.0
    %296 = vmatpush1.msra.mxu0 0.0
    %297 = vmatprep.subr.mxu0 0.0
    %298 = vmatpush1.msra.mxu0 0.0
    %299 = vmatprep.subr.mxu0 0.0
    %300 = vmatpush1.msra.mxu0 0.0
    %301 = vmatprep.subr.mxu0 %v62
    %302 = vmatpush1.msra.mxu0 %v61
    %303 = vmatprep.subr.mxu0 %v60
    %304 = vmatpush1.msra.mxu0 %v59
    %305 = vmatprep.subr.mxu0 %v58
    %306 = vmatpush1.msra.mxu0 %v57
    %307 = vmatprep.subr.mxu0 %v56
    %308 = vmatpush1.msra.mxu0 %v55
    %309 = vmatprep.subr.mxu0 %v54
    %310 = vmatpush1.msra.mxu0 %v53
    %311 = vmatprep.subr.mxu0 %v52
    %312 = vmatpush1.msra.mxu0 %v51
    %313 = vmatprep.subr.mxu0 %v50
    %314 = vmatpush1.msra.mxu0 %v49
    %315 = vmatprep.subr.mxu0 %v48
    %316 = vmatpush1.msra.mxu0 %v47
    %317 = vmatprep.subr.mxu0 0.0
    %318 = vmatpush2.msra.mxu0 0.0
    %319 = vmatprep.subr.mxu0 0.0
    %320 = vmatpush2.msra.mxu0 0.0
    %321 = vmatprep.subr.mxu0 0.0
    %322 = vmatpush2.msra.mxu0 0.0
    %323 = vmatprep.subr.mxu0 0.0
    %324 = vmatpush2.msra.mxu0 0.0
    %325 = vmatprep.subr.mxu0 0.0
    %326 = vmatpush2.msra.mxu0 0.0
    %327 = vmatprep.subr.mxu0 0.0
    %328 = vmatpush2.msra.mxu0 0.0
    %329 = vmatprep.subr.mxu0 0.0
    %330 = vmatpush2.msra.mxu0 0.0
    %331 = vmatprep.subr.mxu0 0.0
    %332 = vmatpush2.msra.mxu0 0.0
    %333 = vmatprep.subr.mxu0 0.0
    %334 = vmatpush2.msra.mxu0 0.0
    %335 = vmatprep.subr.mxu0 0.0
    %336 = vmatpush2.msra.mxu0 0.0
    %337 = vmatprep.subr.mxu0 0.0
    %338 = vmatpush2.msra.mxu0 0.0
    %339 = vmatprep.subr.mxu0 0.0
    %340 = vmatpush2.msra.mxu0 0.0
    %341 = vmatprep.subr.mxu0 0.0
    %342 = vmatpush2.msra.mxu0 0.0
    %343 = vmatprep.subr.mxu0 0.0
    %344 = vmatpush2.msra.mxu0 0.0
    %345 = vmatprep.subr.mxu0 0.0
    %346 = vmatpush2.msra.mxu0 0.0
    %347 = vmatprep.subr.mxu0 0.0
    %348 = vmatpush2.msra.mxu0 0.0
    %349 = vmatprep.mubr.f32.mxu0 0.0
    %350 = vmatmul.mubr.f32.gmra.mxu0 %v283
    %v351 = vpop.f32.mrf.mxu0
    %v352 = vadd.f32 0.0, %v351
    %v353 = vpop.f32.mrf.mxu0
    %v354 = vadd.f32 0.0, %v353
    %355 = vdwg.mxu0
    %v356 = vadd.f32 %v280, %v352
    %v357 = vadd.f32 %v281, %v354
    %v358 = vmul.f32 %v356, 0.5
    %v359 = vmul.f32 %v357, 0.5
    %v360 = vtanh.pop %v358
    %v361 = vtanh.pop %v359
    %v362 = vmul.f32 %v360, 0.5
    %v363 = vmul.f32 %v361, 0.5
    %v364 = vadd.f32 %v362, 0.5
    %v365 = vadd.f32 %v363, 0.5
    %v366 = vtanh.pop %v357
    %v367 = vmul.f32 %v364, %v272
    %369 = vrot.lane.b32.xlu0 %v366, 64
    %v370 = vpop.permute.xlu0 %369
    %v372 = vmul.f32 %v364, %v370
    %374 = vrot.lane.b32.xlu0 %v372, 64
    %v375 = vpop.permute.xlu0 %374
    %v377 = vadd.f32 %v367, %v375
    %v378 = vtanh.pop %v377
    %380 = vrot.lane.b32.xlu0 %v378, 64
    %v381 = vpop.permute.xlu0 %380
    %v383 = vmul.f32 %v365, %v381
    %s384 = scalar_lea.vmem [#allocation4], 48
    %v385 = vld [vmem:[%s384] sm:$0xff]
    %v386 = vld [vmem:[%s384 + $0x8] sm:$0xff]
    %v388 = vsel %vm67, %v383, 0
    %390 = vmatprep.subr.mxu0 0.0
    %391 = vmatpush1.msra.mxu0 0.0
    %392 = vmatprep.subr.mxu0 0.0
    %393 = vmatpush1.msra.mxu0 0.0
    %394 = vmatprep.subr.mxu0 0.0
    %395 = vmatpush1.msra.mxu0 0.0
    %396 = vmatprep.subr.mxu0 0.0
    %397 = vmatpush1.msra.mxu0 0.0
    %398 = vmatprep.subr.mxu0 0.0
    %399 = vmatpush1.msra.mxu0 0.0
    %400 = vmatprep.subr.mxu0 0.0
    %401 = vmatpush1.msra.mxu0 0.0
    %402 = vmatprep.subr.mxu0 0.0
    %403 = vmatpush1.msra.mxu0 0.0
    %404 = vmatprep.subr.mxu0 0.0
    %405 = vmatpush1.msra.mxu0 0.0
    %406 = vmatprep.subr.mxu0 %v62
    %407 = vmatpush1.msra.mxu0 %v61
    %408 = vmatprep.subr.mxu0 %v60
    %409 = vmatpush1.msra.mxu0 %v59
    %410 = vmatprep.subr.mxu0 %v58
    %411 = vmatpush1.msra.mxu0 %v57
    %412 = vmatprep.subr.mxu0 %v56
    %413 = vmatpush1.msra.mxu0 %v55
    %414 = vmatprep.subr.mxu0 %v54
    %415 = vmatpush1.msra.mxu0 %v53
    %416 = vmatprep.subr.mxu0 %v52
    %417 = vmatpush1.msra.mxu0 %v51
    %418 = vmatprep.subr.mxu0 %v50
    %419 = vmatpush1.msra.mxu0 %v49
    %420 = vmatprep.subr.mxu0 %v48
    %421 = vmatpush1.msra.mxu0 %v47
    %422 = vmatprep.subr.mxu0 0.0
    %423 = vmatpush2.msra.mxu0 0.0
    %424 = vmatprep.subr.mxu0 0.0
    %425 = vmatpush2.msra.mxu0 0.0
    %426 = vmatprep.subr.mxu0 0.0
    %427 = vmatpush2.msra.mxu0 0.0
    %428 = vmatprep.subr.mxu0 0.0
    %429 = vmatpush2.msra.mxu0 0.0
    %430 = vmatprep.subr.mxu0 0.0
    %431 = vmatpush2.msra.mxu0 0.0
    %432 = vmatprep.subr.mxu0 0.0
    %433 = vmatpush2.msra.mxu0 0.0
    %434 = vmatprep.subr.mxu0 0.0
    %435 = vmatpush2.msra.mxu0 0.0
    %436 = vmatprep.subr.mxu0 0.0
    %437 = vmatpush2.msra.mxu0 0.0
    %438 = vmatprep.subr.mxu0 0.0
    %439 = vmatpush2.msra.mxu0 0.0
    %440 = vmatprep.subr.mxu0 0.0
    %441 = vmatpush2.msra.mxu0 0.0
    %442 = vmatprep.subr.mxu0 0.0
    %443 = vmatpush2.msra.mxu0 0.0
    %444 = vmatprep.subr.mxu0 0.0
    %445 = vmatpush2.msra.mxu0 0.0
    %446 = vmatprep.subr.mxu0 0.0
    %447 = vmatpush2.msra.mxu0 0.0
    %448 = vmatprep.subr.mxu0 0.0
    %449 = vmatpush2.msra.mxu0 0.0
    %450 = vmatprep.subr.mxu0 0.0
    %451 = vmatpush2.msra.mxu0 0.0
    %452 = vmatprep.subr.mxu0 0.0
    %453 = vmatpush2.msra.mxu0 0.0
    %454 = vmatprep.mubr.f32.mxu0 0.0
    %455 = vmatmul.mubr.f32.gmra.mxu0 %v388
    %v456 = vpop.f32.mrf.mxu0
    %v457 = vadd.f32 0.0, %v456
    %v458 = vpop.f32.mrf.mxu0
    %v459 = vadd.f32 0.0, %v458
    %460 = vdwg.mxu0
    %v461 = vadd.f32 %v385, %v457
    %v462 = vadd.f32 %v386, %v459
    %v463 = vmul.f32 %v461, 0.5
    %v464 = vmul.f32 %v462, 0.5
    %v465 = vtanh.pop %v463
    %v466 = vtanh.pop %v464
    %v467 = vmul.f32 %v465, 0.5
    %v468 = vmul.f32 %v466, 0.5
    %v469 = vadd.f32 %v467, 0.5
    %v470 = vadd.f32 %v468, 0.5
    %v471 = vtanh.pop %v462
    %v472 = vmul.f32 %v469, %v377
    %474 = vrot.lane.b32.xlu0 %v471, 64
    %v475 = vpop.permute.xlu0 %474
    %v477 = vmul.f32 %v469, %v475
    %479 = vrot.lane.b32.xlu0 %v477, 64
    %v480 = vpop.permute.xlu0 %479
    %v482 = vadd.f32 %v472, %v480
    %v483 = vtanh.pop %v482
    %485 = vrot.lane.b32.xlu0 %v483, 64
    %v486 = vpop.permute.xlu0 %485
    %v488 = vmul.f32 %v470, %v486
    %s489 = scalar_lea.vmem [#allocation4], 64
    %v490 = vld [vmem:[%s489] sm:$0xff]
    %v491 = vld [vmem:[%s489 + $0x8] sm:$0xff]
    %v493 = vsel %vm67, %v488, 0
    %495 = vmatprep.subr.mxu0 0.0
    %496 = vmatpush1.msra.mxu0 0.0
    %497 = vmatprep.subr.mxu0 0.0
    %498 = vmatpush1.msra.mxu0 0.0
    %499 = vmatprep.subr.mxu0 0.0
    %500 = vmatpush1.msra.mxu0 0.0
    %501 = vmatprep.subr.mxu0 0.0
    %502 = vmatpush1.msra.mxu0 0.0
    %503 = vmatprep.subr.mxu0 0.0
    %504 = vmatpush1.msra.mxu0 0.0
    %505 = vmatprep.subr.mxu0 0.0
    %506 = vmatpush1.msra.mxu0 0.0
    %507 = vmatprep.subr.mxu0 0.0
    %508 = vmatpush1.msra.mxu0 0.0
    %509 = vmatprep.subr.mxu0 0.0
    %510 = vmatpush1.msra.mxu0 0.0
    %511 = vmatprep.subr.mxu0 %v62
    %512 = vmatpush1.msra.mxu0 %v61
    %513 = vmatprep.subr.mxu0 %v60
    %514 = vmatpush1.msra.mxu0 %v59
    %515 = vmatprep.subr.mxu0 %v58
    %516 = vmatpush1.msra.mxu0 %v57
    %517 = vmatprep.subr.mxu0 %v56
    %518 = vmatpush1.msra.mxu0 %v55
    %519 = vmatprep.subr.mxu0 %v54
    %520 = vmatpush1.msra.mxu0 %v53
    %521 = vmatprep.subr.mxu0 %v52
    %522 = vmatpush1.msra.mxu0 %v51
    %523 = vmatprep.subr.mxu0 %v50
    %524 = vmatpush1.msra.mxu0 %v49
    %525 = vmatprep.subr.mxu0 %v48
    %526 = vmatpush1.msra.mxu0 %v47
    %527 = vmatprep.subr.mxu0 0.0
    %528 = vmatpush2.msra.mxu0 0.0
    %529 = vmatprep.subr.mxu0 0.0
    %530 = vmatpush2.msra.mxu0 0.0
    %531 = vmatprep.subr.mxu0 0.0
    %532 = vmatpush2.msra.mxu0 0.0
    %533 = vmatprep.subr.mxu0 0.0
    %534 = vmatpush2.msra.mxu0 0.0
    %535 = vmatprep.subr.mxu0 0.0
    %536 = vmatpush2.msra.mxu0 0.0
    %537 = vmatprep.subr.mxu0 0.0
    %538 = vmatpush2.msra.mxu0 0.0
    %539 = vmatprep.subr.mxu0 0.0
    %540 = vmatpush2.msra.mxu0 0.0
    %541 = vmatprep.subr.mxu0 0.0
    %542 = vmatpush2.msra.mxu0 0.0
    %543 = vmatprep.subr.mxu0 0.0
    %544 = vmatpush2.msra.mxu0 0.0
    %545 = vmatprep.subr.mxu0 0.0
    %546 = vmatpush2.msra.mxu0 0.0
    %547 = vmatprep.subr.mxu0 0.0
    %548 = vmatpush2.msra.mxu0 0.0
    %549 = vmatprep.subr.mxu0 0.0
    %550 = vmatpush2.msra.mxu0 0.0
    %551 = vmatprep.subr.mxu0 0.0
    %552 = vmatpush2.msra.mxu0 0.0
    %553 = vmatprep.subr.mxu0 0.0
    %554 = vmatpush2.msra.mxu0 0.0
    %555 = vmatprep.subr.mxu0 0.0
    %556 = vmatpush2.msra.mxu0 0.0
    %557 = vmatprep.subr.mxu0 0.0
    %558 = vmatpush2.msra.mxu0 0.0
    %559 = vmatprep.mubr.f32.mxu0 0.0
    %560 = vmatmul.mubr.f32.gmra.mxu0 %v493
    %v561 = vpop.f32.mrf.mxu0
    %v562 = vadd.f32 0.0, %v561
    %v563 = vpop.f32.mrf.mxu0
    %v564 = vadd.f32 0.0, %v563
    %565 = vdwg.mxu0
    %v566 = vadd.f32 %v490, %v562
    %v567 = vadd.f32 %v491, %v564
    %v568 = vmul.f32 %v566, 0.5
    %v569 = vmul.f32 %v567, 0.5
    %v570 = vtanh.pop %v568
    %v571 = vtanh.pop %v569
    %v572 = vmul.f32 %v570, 0.5
    %v573 = vmul.f32 %v571, 0.5
    %v574 = vadd.f32 %v572, 0.5
    %v575 = vadd.f32 %v573, 0.5
    %v576 = vtanh.pop %v567
    %v577 = vmul.f32 %v574, %v482
    %579 = vrot.lane.b32.xlu0 %v576, 64
    %v580 = vpop.permute.xlu0 %579
    %v582 = vmul.f32 %v574, %v580
    %584 = vrot.lane.b32.xlu0 %v582, 64
    %v585 = vpop.permute.xlu0 %584
    %v587 = vadd.f32 %v577, %v585
    %v588 = vtanh.pop %v587
    %590 = vrot.lane.b32.xlu0 %v588, 64
    %v591 = vpop.permute.xlu0 %590
    %v593 = vmul.f32 %v575, %v591
    %s594 = scalar_lea.vmem [#allocation4], 80
    %v595 = vld [vmem:[%s594] sm:$0xff]
    %v596 = vld [vmem:[%s594 + $0x8] sm:$0xff]
    %v598 = vsel %vm67, %v593, 0
    %600 = vmatprep.subr.mxu0 0.0
    %601 = vmatpush1.msra.mxu0 0.0
    %602 = vmatprep.subr.mxu0 0.0
    %603 = vmatpush1.msra.mxu0 0.0
    %604 = vmatprep.subr.mxu0 0.0
    %605 = vmatpush1.msra.mxu0 0.0
    %606 = vmatprep.subr.mxu0 0.0
    %607 = vmatpush1.msra.mxu0 0.0
    %608 = vmatprep.subr.mxu0 0.0
    %609 = vmatpush1.msra.mxu0 0.0
    %610 = vmatprep.subr.mxu0 0.0
    %611 = vmatpush1.msra.mxu0 0.0
    %612 = vmatprep.subr.mxu0 0.0
    %613 = vmatpush1.msra.mxu0 0.0
    %614 = vmatprep.subr.mxu0 0.0
    %615 = vmatpush1.msra.mxu0 0.0
    %616 = vmatprep.subr.mxu0 %v62
    %617 = vmatpush1.msra.mxu0 %v61
    %618 = vmatprep.subr.mxu0 %v60
    %619 = vmatpush1.msra.mxu0 %v59
    %620 = vmatprep.subr.mxu0 %v58
    %621 = vmatpush1.msra.mxu0 %v57
    %622 = vmatprep.subr.mxu0 %v56
    %623 = vmatpush1.msra.mxu0 %v55
    %624 = vmatprep.subr.mxu0 %v54
    %625 = vmatpush1.msra.mxu0 %v53
    %626 = vmatprep.subr.mxu0 %v52
    %627 = vmatpush1.msra.mxu0 %v51
    %628 = vmatprep.subr.mxu0 %v50
    %629 = vmatpush1.msra.mxu0 %v49
    %630 = vmatprep.subr.mxu0 %v48
    %631 = vmatpush1.msra.mxu0 %v47
    %632 = vmatprep.subr.mxu0 0.0
    %633 = vmatpush2.msra.mxu0 0.0
    %634 = vmatprep.subr.mxu0 0.0
    %635 = vmatpush2.msra.mxu0 0.0
    %636 = vmatprep.subr.mxu0 0.0
    %637 = vmatpush2.msra.mxu0 0.0
    %638 = vmatprep.subr.mxu0 0.0
    %639 = vmatpush2.msra.mxu0 0.0
    %640 = vmatprep.subr.mxu0 0.0
    %641 = vmatpush2.msra.mxu0 0.0
    %642 = vmatprep.subr.mxu0 0.0
    %643 = vmatpush2.msra.mxu0 0.0
    %644 = vmatprep.subr.mxu0 0.0
    %645 = vmatpush2.msra.mxu0 0.0
    %646 = vmatprep.subr.mxu0 0.0
    %647 = vmatpush2.msra.mxu0 0.0
    %648 = vmatprep.subr.mxu0 0.0
    %649 = vmatpush2.msra.mxu0 0.0
    %650 = vmatprep.subr.mxu0 0.0
    %651 = vmatpush2.msra.mxu0 0.0
    %652 = vmatprep.subr.mxu0 0.0
    %653 = vmatpush2.msra.mxu0 0.0
    %654 = vmatprep.subr.mxu0 0.0
    %655 = vmatpush2.msra.mxu0 0.0
    %656 = vmatprep.subr.mxu0 0.0
    %657 = vmatpush2.msra.mxu0 0.0
    %658 = vmatprep.subr.mxu0 0.0
    %659 = vmatpush2.msra.mxu0 0.0
    %660 = vmatprep.subr.mxu0 0.0
    %661 = vmatpush2.msra.mxu0 0.0
    %662 = vmatprep.subr.mxu0 0.0
    %663 = vmatpush2.msra.mxu0 0.0
    %664 = vmatprep.mubr.f32.mxu0 0.0
    %665 = vmatmul.mubr.f32.gmra.mxu0 %v598
    %v666 = vpop.f32.mrf.mxu0
    %v667 = vadd.f32 0.0, %v666
    %v668 = vpop.f32.mrf.mxu0
    %v669 = vadd.f32 0.0, %v668
    %670 = vdwg.mxu0
    %v671 = vadd.f32 %v595, %v667
    %v672 = vadd.f32 %v596, %v669
    %v673 = vmul.f32 %v671, 0.5
    %v674 = vmul.f32 %v672, 0.5
    %v675 = vtanh.pop %v673
    %v676 = vtanh.pop %v674
    %v677 = vmul.f32 %v675, 0.5
    %v678 = vmul.f32 %v676, 0.5
    %v679 = vadd.f32 %v677, 0.5
    %v680 = vadd.f32 %v678, 0.5
    %v681 = vtanh.pop %v672
    %v682 = vmul.f32 %v679, %v587
    %684 = vrot.lane.b32.xlu0 %v681, 64
    %v685 = vpop.permute.xlu0 %684
    %v687 = vmul.f32 %v679, %v685
    %689 = vrot.lane.b32.xlu0 %v687, 64
    %v690 = vpop.permute.xlu0 %689
    %v692 = vadd.f32 %v682, %v690
    %v693 = vtanh.pop %v692
    %695 = vrot.lane.b32.xlu0 %v693, 64
    %v696 = vpop.permute.xlu0 %695
    %v698 = vmul.f32 %v680, %v696
    %s699 = scalar_lea.vmem [#allocation4], 96
    %v700 = vld [vmem:[%s699] sm:$0xff]
    %v701 = vld [vmem:[%s699 + $0x8] sm:$0xff]
    %v703 = vsel %vm67, %v698, 0
    %705 = vmatprep.subr.mxu0 0.0
    %706 = vmatpush1.msra.mxu0 0.0
    %707 = vmatprep.subr.mxu0 0.0
    %708 = vmatpush1.msra.mxu0 0.0
    %709 = vmatprep.subr.mxu0 0.0
    %710 = vmatpush1.msra.mxu0 0.0
    %711 = vmatprep.subr.mxu0 0.0
    %712 = vmatpush1.msra.mxu0 0.0
    %713 = vmatprep.subr.mxu0 0.0
    %714 = vmatpush1.msra.mxu0 0.0
    %715 = vmatprep.subr.mxu0 0.0
    %716 = vmatpush1.msra.mxu0 0.0
    %717 = vmatprep.subr.mxu0 0.0
    %718 = vmatpush1.msra.mxu0 0.0
    %719 = vmatprep.subr.mxu0 0.0
    %720 = vmatpush1.msra.mxu0 0.0
    %721 = vmatprep.subr.mxu0 %v62
    %722 = vmatpush1.msra.mxu0 %v61
    %723 = vmatprep.subr.mxu0 %v60
    %724 = vmatpush1.msra.mxu0 %v59
    %725 = vmatprep.subr.mxu0 %v58
    %726 = vmatpush1.msra.mxu0 %v57
    %727 = vmatprep.subr.mxu0 %v56
    %728 = vmatpush1.msra.mxu0 %v55
    %729 = vmatprep.subr.mxu0 %v54
    %730 = vmatpush1.msra.mxu0 %v53
    %731 = vmatprep.subr.mxu0 %v52
    %732 = vmatpush1.msra.mxu0 %v51
    %733 = vmatprep.subr.mxu0 %v50
    %734 = vmatpush1.msra.mxu0 %v49
    %735 = vmatprep.subr.mxu0 %v48
    %736 = vmatpush1.msra.mxu0 %v47
    %737 = vmatprep.subr.mxu0 0.0
    %738 = vmatpush2.msra.mxu0 0.0
    %739 = vmatprep.subr.mxu0 0.0
    %740 = vmatpush2.msra.mxu0 0.0
    %741 = vmatprep.subr.mxu0 0.0
    %742 = vmatpush2.msra.mxu0 0.0
    %743 = vmatprep.subr.mxu0 0.0
    %744 = vmatpush2.msra.mxu0 0.0
    %745 = vmatprep.subr.mxu0 0.0
    %746 = vmatpush2.msra.mxu0 0.0
    %747 = vmatprep.subr.mxu0 0.0
    %748 = vmatpush2.msra.mxu0 0.0
    %749 = vmatprep.subr.mxu0 0.0
    %750 = vmatpush2.msra.mxu0 0.0
    %751 = vmatprep.subr.mxu0 0.0
    %752 = vmatpush2.msra.mxu0 0.0
    %753 = vmatprep.subr.mxu0 0.0
    %754 = vmatpush2.msra.mxu0 0.0
    %755 = vmatprep.subr.mxu0 0.0
    %756 = vmatpush2.msra.mxu0 0.0
    %757 = vmatprep.subr.mxu0 0.0
    %758 = vmatpush2.msra.mxu0 0.0
    %759 = vmatprep.subr.mxu0 0.0
    %760 = vmatpush2.msra.mxu0 0.0
    %761 = vmatprep.subr.mxu0 0.0
    %762 = vmatpush2.msra.mxu0 0.0
    %763 = vmatprep.subr.mxu0 0.0
    %764 = vmatpush2.msra.mxu0 0.0
    %765 = vmatprep.subr.mxu0 0.0
    %766 = vmatpush2.msra.mxu0 0.0
    %767 = vmatprep.subr.mxu0 0.0
    %768 = vmatpush2.msra.mxu0 0.0
    %769 = vmatprep.mubr.f32.mxu0 0.0
    %770 = vmatmul.mubr.f32.gmra.mxu0 %v703
    %v771 = vpop.f32.mrf.mxu0
    %v772 = vadd.f32 0.0, %v771
    %v773 = vpop.f32.mrf.mxu0
    %v774 = vadd.f32 0.0, %v773
    %775 = vdwg.mxu0
    %v776 = vadd.f32 %v700, %v772
    %v777 = vadd.f32 %v701, %v774
    %v778 = vmul.f32 %v776, 0.5
    %v779 = vmul.f32 %v777, 0.5
    %v780 = vtanh.pop %v778
    %v781 = vtanh.pop %v779
    %v782 = vmul.f32 %v780, 0.5
    %v783 = vmul.f32 %v781, 0.5
    %v784 = vadd.f32 %v782, 0.5
    %v785 = vadd.f32 %v783, 0.5
    %v786 = vtanh.pop %v777
    %v787 = vmul.f32 %v784, %v692
    %789 = vrot.lane.b32.xlu0 %v786, 64
    %v790 = vpop.permute.xlu0 %789
    %v792 = vmul.f32 %v784, %v790
    %794 = vrot.lane.b32.xlu0 %v792, 64
    %v795 = vpop.permute.xlu0 %794
    %v797 = vadd.f32 %v787, %v795
    %v798 = vtanh.pop %v797
    %800 = vrot.lane.b32.xlu0 %v798, 64
    %v801 = vpop.permute.xlu0 %800
    %v803 = vmul.f32 %v785, %v801
    %s804 = scalar_lea.vmem [#allocation4], 112
    %v805 = vld [vmem:[%s804] sm:$0xff]
    %v806 = vld [vmem:[%s804 + $0x8] sm:$0xff]
    %v808 = vsel %vm67, %v803, 0
    %810 = vmatprep.subr.mxu0 0.0
    %811 = vmatpush1.msra.mxu0 0.0
    %812 = vmatprep.subr.mxu0 0.0
    %813 = vmatpush1.msra.mxu0 0.0
    %814 = vmatprep.subr.mxu0 0.0
    %815 = vmatpush1.msra.mxu0 0.0
    %816 = vmatprep.subr.mxu0 0.0
    %817 = vmatpush1.msra.mxu0 0.0
    %818 = vmatprep.subr.mxu0 0.0
    %819 = vmatpush1.msra.mxu0 0.0
    %820 = vmatprep.subr.mxu0 0.0
    %821 = vmatpush1.msra.mxu0 0.0
    %822 = vmatprep.subr.mxu0 0.0
    %823 = vmatpush1.msra.mxu0 0.0
    %824 = vmatprep.subr.mxu0 0.0
    %825 = vmatpush1.msra.mxu0 0.0
    %826 = vmatprep.subr.mxu0 %v62
    %827 = vmatpush1.msra.mxu0 %v61
    %828 = vmatprep.subr.mxu0 %v60
    %829 = vmatpush1.msra.mxu0 %v59
    %830 = vmatprep.subr.mxu0 %v58
    %831 = vmatpush1.msra.mxu0 %v57
    %832 = vmatprep.subr.mxu0 %v56
    %833 = vmatpush1.msra.mxu0 %v55
    %834 = vmatprep.subr.mxu0 %v54
    %835 = vmatpush1.msra.mxu0 %v53
    %836 = vmatprep.subr.mxu0 %v52
    %837 = vmatpush1.msra.mxu0 %v51
    %838 = vmatprep.subr.mxu0 %v50
    %839 = vmatpush1.msra.mxu0 %v49
    %840 = vmatprep.subr.mxu0 %v48
    %841 = vmatpush1.msra.mxu0 %v47
    %842 = vmatprep.subr.mxu0 0.0
    %843 = vmatpush2.msra.mxu0 0.0
    %844 = vmatprep.subr.mxu0 0.0
    %845 = vmatpush2.msra.mxu0 0.0
    %846 = vmatprep.subr.mxu0 0.0
    %847 = vmatpush2.msra.mxu0 0.0
    %848 = vmatprep.subr.mxu0 0.0
    %849 = vmatpush2.msra.mxu0 0.0
    %850 = vmatprep.subr.mxu0 0.0
    %851 = vmatpush2.msra.mxu0 0.0
    %852 = vmatprep.subr.mxu0 0.0
    %853 = vmatpush2.msra.mxu0 0.0
    %854 = vmatprep.subr.mxu0 0.0
    %855 = vmatpush2.msra.mxu0 0.0
    %856 = vmatprep.subr.mxu0 0.0
    %857 = vmatpush2.msra.mxu0 0.0
    %858 = vmatprep.subr.mxu0 0.0
    %859 = vmatpush2.msra.mxu0 0.0
    %860 = vmatprep.subr.mxu0 0.0
    %861 = vmatpush2.msra.mxu0 0.0
    %862 = vmatprep.subr.mxu0 0.0
    %863 = vmatpush2.msra.mxu0 0.0
    %864 = vmatprep.subr.mxu0 0.0
    %865 = vmatpush2.msra.mxu0 0.0
    %866 = vmatprep.subr.mxu0 0.0
    %867 = vmatpush2.msra.mxu0 0.0
    %868 = vmatprep.subr.mxu0 0.0
    %869 = vmatpush2.msra.mxu0 0.0
    %870 = vmatprep.subr.mxu0 0.0
    %871 = vmatpush2.msra.mxu0 0.0
    %872 = vmatprep.subr.mxu0 0.0
    %873 = vmatpush2.msra.mxu0 0.0
    %874 = vmatprep.mubr.f32.mxu0 0.0
    %875 = vmatmul.mubr.f32.gmra.mxu0 %v808
    %v876 = vpop.f32.mrf.mxu0
    %v877 = vadd.f32 0.0, %v876
    %v878 = vpop.f32.mrf.mxu0
    %v879 = vadd.f32 0.0, %v878
    %880 = vdwg.mxu0
    %v881 = vadd.f32 %v805, %v877
    %v882 = vadd.f32 %v806, %v879
    %v883 = vmul.f32 %v881, 0.5
    %v884 = vmul.f32 %v882, 0.5
    %v885 = vtanh.pop %v883
    %v886 = vtanh.pop %v884
    %v887 = vmul.f32 %v885, 0.5
    %v888 = vmul.f32 %v886, 0.5
    %v889 = vadd.f32 %v887, 0.5
    %v890 = vadd.f32 %v888, 0.5
    %v891 = vtanh.pop %v882
    %v892 = vmul.f32 %v889, %v797
    %894 = vrot.lane.b32.xlu0 %v891, 64
    %v895 = vpop.permute.xlu0 %894
    %v897 = vmul.f32 %v889, %v895
    %899 = vrot.lane.b32.xlu0 %v897, 64
    %v900 = vpop.permute.xlu0 %899
    %v902 = vadd.f32 %v892, %v900
    %v903 = vtanh.pop %v902
    %905 = vrot.lane.b32.xlu0 %v903, 64
    %v906 = vpop.permute.xlu0 %905
    %v908 = vmul.f32 %v890, %v906
    %909 = vst.msk [vmem:[#allocation2] sm:$0xff] %vm67, %v908
    %911 = vrot.lane.b32.xlu0 %v902, 64
    %v912 = vpop.permute.xlu0 %911
    %914 = vst.msk [vmem:[#allocation3] sm:$0xff] %vm67, %v912
    // Predicated region
    $region22: #{tpu_custom_call.1} parent=1 // pred_check
      %p915 = pneg %p40
    $region23: #{tpu_custom_call.1} parent=1 // pred_check_branch
      %917 = sbr.rel (%p915) target = $region25
    $region24: #{tpu_custom_call.1} parent=1 // pred_region
      %918 = vst.msk [vmem:[#allocation9] sm:$0xff] %vm67, %v908
    $region25: #{tpu_custom_call.1} parent=1 // pred_fallthru
      _
    // Predicated region
    $region26: #{tpu_custom_call.1} parent=1 // pred_check
      _
    $region27: #{tpu_custom_call.1} parent=1 // pred_check_branch
      %920 = sbr.rel (0) target = $region29
    $region28: #{tpu_custom_call.1} parent=1 // pred_region
      %s922 = ssub.s32 128, 128
      %923 = vsyncadd [#allocation6], %s922
      %s925 = sshll.u32 [#allocation9], 4
      %s926 = int_to_ptr.vmem [resolvable:$true] %s925
      %928 = dma.vmem_to_hbm [thread:$0]  %s926, 128, %s2, [#allocation6]
    $region29: #{tpu_custom_call.1} parent=1 // pred_fallthru
      _
    // Predicated region
    $region30: #{tpu_custom_call.1} parent=1 // pred_check
      _
    $region31: #{tpu_custom_call.1} parent=1 // pred_check_branch
      %930 = sbr.rel (0) target = $region33
    $region32: #{tpu_custom_call.1} parent=1 // pred_region
      %931 = dma.done [#allocation6], 128
    $region33: #{tpu_custom_call.1} parent=1 // pred_fallthru
      _
    %932 = vsyncpa [#allocation5], 1
    %933 = vsyncpa [#allocation8], 1
    %934 = vsyncpa [#allocation6], 1

</llo_original>
